<compile_context>
chip_gen: v5e
topology: v5e:2x2
jax: 0.10.0
libtpu: 0.0.40
codegen_flags: <defaults>
</compile_context>

<pallas_src>
import math

import numpy as np
import jax
import jax.numpy as jnp
from jax import lax
from jax.experimental import pallas as pl
from jax.experimental.pallas import tpu as pltpu

# --- small, deterministic config -------------------------------------------
BATCH = 2
B_PAD = 8              # pad batch to a full sublane tile
SEQ = 16               # text sequence length
AUDIO_IN = 16
VIDEO_IN = 32
TEXT_IN = 32
AUDIO_H = 32
VIDEO_H = 32
TEXT_H = 32            # LSTM hidden size
TEXT_OUT = 32
RANK = 4
OUTPUT_DIM = 8
BN_EPS = 1e-5

AV_IN = AUDIO_IN + VIDEO_IN      # 48  concat audio|video input
AV_H = AUDIO_H + VIDEO_H         # 64  concat audio|video hidden
RO = RANK * OUTPUT_DIM           # 32  rank*output lanes
FAC_IN = AV_H + TEXT_H           # 96  fused factor input width

# --- weight-slab row offsets (all multiples of 8 -> tile-aligned slices) ----
ROW_W1 = 0                       # [48, 64]  fused SubNet linear_1 (BN folded)
ROW_W2 = ROW_W1 + AV_IN          # 48   [64, 64]
ROW_W3 = ROW_W2 + AV_H           # 112  [64, 64]
ROW_WIH = ROW_W3 + AV_H          # 176  [32, 128] LSTM input proj, gates (i,f,o,g)
ROW_WHH = ROW_WIH + TEXT_IN      # 208  [32, 128] LSTM recurrent proj
ROW_WFAC = ROW_WHH + TEXT_H      # 240  [96, 96]  block-diag factors (text Linear folded)
ROW_WFUSE = ROW_WFAC + FAC_IN    # 336  [32, 8]   rank-weighted sum
ROW_B1 = ROW_WFUSE + RO          # 368  [1, 64]
ROW_B2 = ROW_B1 + 8              # 376  [1, 64]
ROW_B3 = ROW_B2 + 8              # 384  [1, 64]
ROW_BIH = ROW_B3 + 8             # 392  [1, 128]
ROW_BFAC = ROW_BIH + 8           # 400  [1, 96]
ROW_FBIAS = ROW_BFAC + 8         # 408  [1, 8]
SLAB_ROWS = ROW_FBIAS + 8        # 416
SLAB_LANES = 128


def lmf_kernel(x_ref, av_ref, w_ref, out_ref):
    """x_ref: [T*Bp, E] time-major text; av_ref: [Bp, 48]; w_ref: [416, 128]."""
    H = TEXT_H
    Bp = av_ref.shape[0]
    T = x_ref.shape[0] // Bp

    # ---- fused audio|video SubNet: 3 block-diagonal matmuls + ReLU ----------
    av = av_ref[...]
    y = jnp.maximum(
        jnp.dot(av, w_ref[ROW_W1:ROW_W1 + AV_IN, 0:AV_H],
                preferred_element_type=jnp.float32)
        + w_ref[ROW_B1:ROW_B1 + 1, 0:AV_H], 0.0)
    y = jnp.maximum(
        jnp.dot(y, w_ref[ROW_W2:ROW_W2 + AV_H, 0:AV_H],
                preferred_element_type=jnp.float32)
        + w_ref[ROW_B2:ROW_B2 + 1, 0:AV_H], 0.0)
    av_h = jnp.maximum(
        jnp.dot(y, w_ref[ROW_W3:ROW_W3 + AV_H, 0:AV_H],
                preferred_element_type=jnp.float32)
        + w_ref[ROW_B3:ROW_B3 + 1, 0:AV_H], 0.0)            # [Bp, 64]

    # ---- LSTM: hoisted input projection + fully unrolled recurrence ---------
    wih = w_ref[ROW_WIH:ROW_WIH + TEXT_IN, :]               # [32, 128]
    whh = w_ref[ROW_WHH:ROW_WHH + H, :]                     # [32, 128]
    bih = w_ref[ROW_BIH:ROW_BIH + 1, :]                     # [1, 128]
    gx = jnp.dot(x_ref[...], wih,
                 preferred_element_type=jnp.float32) + bih  # [T*Bp, 4H]

    h = jnp.zeros((Bp, H), jnp.float32)
    c = jnp.zeros((Bp, H), jnp.float32)
    for t in range(T):  # full unroll; static slices keep gx in vregs
        g = gx[t * Bp:(t + 1) * Bp, :] + jnp.dot(
            h, whh, preferred_element_type=jnp.float32)     # [Bp, 4H]
        # packed gate order [i, f, o | g]: one sigmoid slice, one tanh slice
        s = jax.nn.sigmoid(g[:, :3 * H])
        i = s[:, 0 * H:1 * H]
        f = s[:, 1 * H:2 * H]
        o = s[:, 2 * H:3 * H]
        gg = jnp.tanh(g[:, 3 * H:4 * H])
        c = f * c + i * gg
        h = o * jnp.tanh(c)

    # ---- low-rank fusion (TextSubNet Linear already folded into text factor)
    favv = (jnp.dot(av_h, w_ref[ROW_WFAC:ROW_WFAC + AV_H, 0:AV_H],
                    preferred_element_type=jnp.float32)
            + w_ref[ROW_BFAC:ROW_BFAC + 1, 0:AV_H])         # [Bp, 64] = [fa|fv]
    ft = (jnp.dot(h, w_ref[ROW_WFAC + AV_H:ROW_WFAC + FAC_IN, AV_H:FAC_IN],
                  preferred_element_type=jnp.float32)
          + w_ref[ROW_BFAC:ROW_BFAC + 1, AV_H:FAC_IN])      # [Bp, 32]
    prod = favv[:, 0:RO] * favv[:, RO:2 * RO] * ft          # [Bp, 32]

    # out[b, o] = sum_r w[r] * prod[b, r*O + o] + bias[o]  (use_softmax=False)
    out_ref[...] = (jnp.dot(prod, w_ref[ROW_WFUSE:ROW_WFUSE + RO, 0:OUTPUT_DIM],
                            preferred_element_type=jnp.float32)
                    + w_ref[ROW_FBIAS:ROW_FBIAS + 1, 0:OUTPUT_DIM])


def _pad_batch(x, bpad):
    pad = [(0, bpad - x.shape[0])] + [(0, 0)] * (x.ndim - 1)
    return jnp.pad(x, pad)


@jax.jit
def lmf_forward(audio_x, video_x, text_x, wslab):
    """audio_x: [B, A_in], video_x: [B, V_in], text_x: [B, T, E_text]."""
    B = audio_x.shape[0]
    a = _pad_batch(audio_x.astype(jnp.float32), B_PAD)
    v = _pad_batch(video_x.astype(jnp.float32), B_PAD)
    av = jnp.concatenate([a, v], axis=1)                       # [Bp, 48]
    t = _pad_batch(text_x.astype(jnp.float32), B_PAD)          # [Bp, T, E]
    x_flat = jnp.transpose(t, (1, 0, 2)).reshape(SEQ * B_PAD, TEXT_IN)

    vmem = pl.BlockSpec(memory_space=pltpu.MemorySpace.VMEM)
    out = pl.pallas_call(
        lmf_kernel,
        out_shape=jax.ShapeDtypeStruct((B_PAD, OUTPUT_DIM), jnp.float32),
        in_specs=[vmem, vmem, vmem],
        out_specs=vmem,
    )(x_flat, av, wslab)
    return out[:B]


# --- parameter construction --------------------------------------------------
def init_raw_params(key):
    """PyTorch-layout parameters with PyTorch-style init (deterministic)."""
    ks = list(jax.random.split(key, 32))
    kit = iter(ks)

    def u(shape, scale):
        return jax.random.uniform(next(kit), shape, jnp.float32, -scale, scale)

    def subnet(in_size, hid):
        s1 = 1.0 / math.sqrt(in_size)
        s2 = 1.0 / math.sqrt(hid)
        return dict(
            gamma=jax.random.uniform(next(kit), (in_size,), jnp.float32, 0.5, 1.5),
            beta=u((in_size,), 0.1),
            rm=0.1 * jax.random.normal(next(kit), (in_size,), jnp.float32),
            rv=jax.random.uniform(next(kit), (in_size,), jnp.float32, 0.5, 1.5),
            w1=u((hid, in_size), s1), b1=u((hid,), s1),
            w2=u((hid, hid), s2), b2=u((hid,), s2),
            w3=u((hid, hid), s2), b3=u((hid,), s2),
        )

    s_lstm = 1.0 / math.sqrt(TEXT_H)
    s_tl = 1.0 / math.sqrt(TEXT_H)

    def xavier(shape):
        fan_in, fan_out = shape[-2], shape[-1]
        std = math.sqrt(2.0 / (fan_in + fan_out))
        return std * jax.random.normal(next(kit), shape, jnp.float32)

    return dict(
        audio=subnet(AUDIO_IN, AUDIO_H),
        video=subnet(VIDEO_IN, VIDEO_H),
        lstm=dict(
            w_ih=u((4 * TEXT_H, TEXT_IN), s_lstm),
            w_hh=u((4 * TEXT_H, TEXT_H), s_lstm),
            b_ih=u((4 * TEXT_H,), s_lstm),
            b_hh=u((4 * TEXT_H,), s_lstm),
        ),
        text_lin=dict(w=u((TEXT_OUT, TEXT_H), s_tl), b=u((TEXT_OUT,), s_tl)),
        audio_factor=xavier((RANK, AUDIO_H + 1, OUTPUT_DIM)),
        video_factor=xavier((RANK, VIDEO_H + 1, OUTPUT_DIM)),
        text_factor=xavier((RANK, TEXT_OUT + 1, OUTPUT_DIM)),
        fusion_weights=xavier((1, RANK)),
        # module inits this to 0; random here so the bias-add path is exercised
        fusion_bias=0.1 * jax.random.normal(next(kit), (1, OUTPUT_DIM), jnp.float32),
    )


def pack_params(raw):
    """Repack raw PyTorch-layout params into ONE f32 [416, 128] slab."""
    H = TEXT_H

    def bn_fold(p):
        scale = p["gamma"] / jnp.sqrt(p["rv"] + BN_EPS)
        shift = p["beta"] - p["rm"] * scale
        w1_eff = (p["w1"] * scale[None, :]).T          # [in, hid], BN folded
        b1_eff = shift @ p["w1"].T + p["b1"]           # [hid]
        return w1_eff, b1_eff

    def blockdiag(blocks):
        rows = sum(b.shape[0] for b in blocks)
        cols = sum(b.shape[1] for b in blocks)
        out = jnp.zeros((rows, cols), jnp.float32)
        r = c = 0
        for b in blocks:
            out = out.at[r:r + b.shape[0], c:c + b.shape[1]].set(b)
            r += b.shape[0]
            c += b.shape[1]
        return out

    pa, pv = raw["audio"], raw["video"]
    aw1, ab1 = bn_fold(pa)
    vw1, vb1 = bn_fold(pv)
    W1 = blockdiag([aw1, vw1])                       # [48, 64]
    W2 = blockdiag([pa["w2"].T, pv["w2"].T])         # [64, 64]
    W3 = blockdiag([pa["w3"].T, pv["w3"].T])         # [64, 64]
    B1 = jnp.concatenate([ab1, vb1])
    B2 = jnp.concatenate([pa["b2"], pv["b2"]])
    B3 = jnp.concatenate([pa["b3"], pv["b3"]])

    # LSTM: reorder gates (i, f, g, o) -> (i, f, o, g); transpose to [in, 4H]
    perm = jnp.concatenate([jnp.arange(0, H), jnp.arange(H, 2 * H),
                            jnp.arange(3 * H, 4 * H), jnp.arange(2 * H, 3 * H)])
    wih = raw["lstm"]["w_ih"][perm].T                # [E, 4H]
    whh = raw["lstm"]["w_hh"][perm].T                # [H, 4H]
    bih = (raw["lstm"]["b_ih"] + raw["lstm"]["b_hh"])[perm]

    def factor_parts(f):
        hid = f.shape[1] - 1
        fb = f[:, 0, :].reshape(RO)                                  # ones row
        fw = jnp.transpose(f[:, 1:, :], (1, 0, 2)).reshape(hid, RO)
        return fw, fb

    afw, afb = factor_parts(raw["audio_factor"])
    vfw, vfb = factor_parts(raw["video_factor"])
    tfw, tfb = factor_parts(raw["text_factor"])
    # fold TextSubNet Linear into the text factor (no nonlinearity between them)
    tw1, tb1 = raw["text_lin"]["w"], raw["text_lin"]["b"]
    tfw_fold = tw1.T @ tfw                                           # [H, RO]
    tfb_fold = tb1 @ tfw + tfb                                       # [RO]

    WFAC = blockdiag([afw, vfw, tfw_fold])           # [96, 96]
    BFAC = jnp.concatenate([afb, vfb, tfb_fold])     # [96]

    WFUSE = jnp.kron(raw["fusion_weights"].reshape(RANK, 1),
                     jnp.eye(OUTPUT_DIM, dtype=jnp.float32))         # [R*O, O]
    FBIAS = raw["fusion_bias"][0]                                    # [O]

    slab = jnp.zeros((SLAB_ROWS, SLAB_LANES), jnp.float32)

    def put(s, row, mat):
        mat = jnp.asarray(mat, jnp.float32)
        if mat.ndim == 1:
            mat = mat[None, :]
        return s.at[row:row + mat.shape[0], 0:mat.shape[1]].set(mat)

    for row, mat in ((ROW_W1, W1), (ROW_W2, W2), (ROW_W3, W3),
                     (ROW_WIH, wih), (ROW_WHH, whh), (ROW_WFAC, WFAC),
                     (ROW_WFUSE, WFUSE), (ROW_B1, B1), (ROW_B2, B2),
                     (ROW_B3, B3), (ROW_BIH, bih), (ROW_BFAC, BFAC),
                     (ROW_FBIAS, FBIAS)):
        slab = put(slab, row, mat)
    return slab


# --- pure-JAX reference (mirrors PyTorch eval-mode LMF.forward) --------------
def reference_forward(audio_x, video_x, text_x, raw):
    def subnet(x, p):
        normed = (x - p["rm"]) / jnp.sqrt(p["rv"] + BN_EPS) * p["gamma"] + p["beta"]
        y = jax.nn.relu(normed @ p["w1"].T + p["b1"])
        y = jax.nn.relu(y @ p["w2"].T + p["b2"])
        y = jax.nn.relu(y @ p["w3"].T + p["b3"])
        return y

    audio_h = subnet(audio_x, raw["audio"])
    video_h = subnet(video_x, raw["video"])

    H = TEXT_H
    wih, whh = raw["lstm"]["w_ih"], raw["lstm"]["w_hh"]
    b = raw["lstm"]["b_ih"] + raw["lstm"]["b_hh"]

    def cell(carry, xt):
        h, c = carry
        g = xt @ wih.T + h @ whh.T + b
        i = jax.nn.sigmoid(g[:, :H])
        f = jax.nn.sigmoid(g[:, H:2 * H])
        gg = jnp.tanh(g[:, 2 * H:3 * H])
        o = jax.nn.sigmoid(g[:, 3 * H:])
        c = f * c + i * gg
        h = o * jnp.tanh(c)
        return (h, c), None

    B = text_x.shape[0]
    z = jnp.zeros((B, H), jnp.float32)
    (h_fin, _), _ = lax.scan(cell, (z, z), jnp.transpose(text_x, (1, 0, 2)))
    text_h = h_fin @ raw["text_lin"]["w"].T + raw["text_lin"]["b"]

    ones = jnp.ones((B, 1), jnp.float32)
    _ah = jnp.concatenate([ones, audio_h], axis=1)
    _vh = jnp.concatenate([ones, video_h], axis=1)
    _th = jnp.concatenate([ones, text_h], axis=1)
    fa = jnp.einsum('bi,rio->rbo', _ah, raw["audio_factor"])
    fv = jnp.einsum('bi,rio->rbo', _vh, raw["video_factor"])
    ft = jnp.einsum('bi,rio->rbo', _th, raw["text_factor"])
    fz = fa * fv * ft
    out = jnp.einsum('r,rbo->bo', raw["fusion_weights"][0], fz) + raw["fusion_bias"]
    return out  # use_softmax=False (module default)


if __name__ == "__main__":
    key = jax.random.PRNGKey(0)
    k_a, k_v, k_t, k_p = jax.random.split(key, 4)

    audio_x = jax.random.normal(k_a, (BATCH, AUDIO_IN), jnp.float32)
    video_x = jax.random.normal(k_v, (BATCH, VIDEO_IN), jnp.float32)
    text_x = jax.random.normal(k_t, (BATCH, SEQ, TEXT_IN), jnp.float32)

    raw = init_raw_params(k_p)
    wslab = pack_params(raw)

    out = jax.block_until_ready(lmf_forward(audio_x, video_x, text_x, wslab))
    ref = jax.block_until_ready(reference_forward(audio_x, video_x, text_x, raw))

    assert out.shape == (BATCH, OUTPUT_DIM)
    np.testing.assert_allclose(np.asarray(out), np.asarray(ref),
                               rtol=1e-2, atol=1e-3)
    print("KERNEL_OK")
</pallas_src>

<mosaic_0001>
module attributes {stable_mosaic.version = 11 : i64} {
  func.func @lmf_kernel(%arg0: memref<128x32xf32, #tpu.memory_space<vmem>>, %arg1: memref<8x48xf32, #tpu.memory_space<vmem>>, %arg2: memref<416x128xf32, #tpu.memory_space<vmem>>, %arg3: memref<8x8xf32, #tpu.memory_space<vmem>>) attributes {dimension_semantics = [], scalar_prefetch = 0 : i64, scratch_operands = 0 : i64, tpu.core_type = #tpu.core_type<tc>} {
    %c0 = arith.constant 0 : index
    %c0_0 = arith.constant 0 : index
    %0 = vector.load %arg1[%c0, %c0_0] : memref<8x48xf32, #tpu.memory_space<vmem>>, vector<8x48xf32>
    %c0_1 = arith.constant 0 : index
    %c0_2 = arith.constant 0 : index
    %1 = vector.load %arg2[%c0_1, %c0_2] : memref<416x128xf32, #tpu.memory_space<vmem>>, vector<48x64xf32>
    %cst = arith.constant dense<0.000000e+00> : vector<8x64xf32>
    %2 = tpu.matmul %0, %1, %cst {dimension_numbers = #tpu.dot_dimension_numbers<[1], [0], [0], [1], [0, 0, 1, 1], [], []>} : vector<8x48xf32>, vector<48x64xf32>, vector<8x64xf32> -> vector<8x64xf32>
    %c368 = arith.constant 368 : index
    %c0_3 = arith.constant 0 : index
    %3 = vector.load %arg2[%c368, %c0_3] : memref<416x128xf32, #tpu.memory_space<vmem>>, vector<1x64xf32>
    %4 = vector.broadcast %3 : vector<1x64xf32> to vector<8x64xf32>
    %5 = arith.addf %2, %4 : vector<8x64xf32>
    %cst_4 = arith.constant 0.000000e+00 : f32
    %6 = vector.broadcast %cst_4 : f32 to vector<8x64xf32>
    %7 = arith.maximumf %5, %6 : vector<8x64xf32>
    %c48 = arith.constant 48 : index
    %c0_5 = arith.constant 0 : index
    %8 = vector.load %arg2[%c48, %c0_5] : memref<416x128xf32, #tpu.memory_space<vmem>>, vector<64x64xf32>
    %cst_6 = arith.constant dense<0.000000e+00> : vector<8x64xf32>
    %9 = tpu.matmul %7, %8, %cst_6 {dimension_numbers = #tpu.dot_dimension_numbers<[1], [0], [0], [1], [0, 0, 1, 1], [], []>} : vector<8x64xf32>, vector<64x64xf32>, vector<8x64xf32> -> vector<8x64xf32>
    %c376 = arith.constant 376 : index
    %c0_7 = arith.constant 0 : index
    %10 = vector.load %arg2[%c376, %c0_7] : memref<416x128xf32, #tpu.memory_space<vmem>>, vector<1x64xf32>
    %11 = vector.broadcast %10 : vector<1x64xf32> to vector<8x64xf32>
    %12 = arith.addf %9, %11 : vector<8x64xf32>
    %cst_8 = arith.constant 0.000000e+00 : f32
    %13 = vector.broadcast %cst_8 : f32 to vector<8x64xf32>
    %14 = arith.maximumf %12, %13 : vector<8x64xf32>
    %c112 = arith.constant 112 : index
    %c0_9 = arith.constant 0 : index
    %15 = vector.load %arg2[%c112, %c0_9] : memref<416x128xf32, #tpu.memory_space<vmem>>, vector<64x64xf32>
    %cst_10 = arith.constant dense<0.000000e+00> : vector<8x64xf32>
    %16 = tpu.matmul %14, %15, %cst_10 {dimension_numbers = #tpu.dot_dimension_numbers<[1], [0], [0], [1], [0, 0, 1, 1], [], []>} : vector<8x64xf32>, vector<64x64xf32>, vector<8x64xf32> -> vector<8x64xf32>
    %c384 = arith.constant 384 : index
    %c0_11 = arith.constant 0 : index
    %17 = vector.load %arg2[%c384, %c0_11] : memref<416x128xf32, #tpu.memory_space<vmem>>, vector<1x64xf32>
    %18 = vector.broadcast %17 : vector<1x64xf32> to vector<8x64xf32>
    %19 = arith.addf %16, %18 : vector<8x64xf32>
    %cst_12 = arith.constant 0.000000e+00 : f32
    %20 = vector.broadcast %cst_12 : f32 to vector<8x64xf32>
    %21 = arith.maximumf %19, %20 : vector<8x64xf32>
    %c176 = arith.constant 176 : index
    %c0_13 = arith.constant 0 : index
    %22 = vector.load %arg2[%c176, %c0_13] : memref<416x128xf32, #tpu.memory_space<vmem>>, vector<32x128xf32>
    %c208 = arith.constant 208 : index
    %c0_14 = arith.constant 0 : index
    %23 = vector.load %arg2[%c208, %c0_14] : memref<416x128xf32, #tpu.memory_space<vmem>>, vector<32x128xf32>
    %c392 = arith.constant 392 : index
    %c0_15 = arith.constant 0 : index
    %24 = vector.load %arg2[%c392, %c0_15] : memref<416x128xf32, #tpu.memory_space<vmem>>, vector<1x128xf32>
    %c0_16 = arith.constant 0 : index
    %c0_17 = arith.constant 0 : index
    %25 = vector.load %arg0[%c0_16, %c0_17] : memref<128x32xf32, #tpu.memory_space<vmem>>, vector<128x32xf32>
    %cst_18 = arith.constant dense<0.000000e+00> : vector<128x128xf32>
    %26 = tpu.matmul %25, %22, %cst_18 {dimension_numbers = #tpu.dot_dimension_numbers<[1], [0], [0], [1], [0, 0, 1, 1], [], []>} : vector<128x32xf32>, vector<32x128xf32>, vector<128x128xf32> -> vector<128x128xf32>
    %27 = vector.broadcast %24 : vector<1x128xf32> to vector<128x128xf32>
    %28 = arith.addf %26, %27 : vector<128x128xf32>
    %cst_19 = arith.constant 0.000000e+00 : f32
    %29 = vector.broadcast %cst_19 : f32 to vector<8x32xf32>
    %cst_20 = arith.constant 0.000000e+00 : f32
    %30 = vector.broadcast %cst_20 : f32 to vector<8x32xf32>
    %31 = vector.extract_strided_slice %28 {offsets = [0, 0], sizes = [8, 128], strides = [1, 1]} : vector<128x128xf32> to vector<8x128xf32>
    %cst_21 = arith.constant dense<0.000000e+00> : vector<8x128xf32>
    %32 = tpu.matmul %29, %23, %cst_21 {dimension_numbers = #tpu.dot_dimension_numbers<[1], [0], [0], [1], [0, 0, 1, 1], [], []>} : vector<8x32xf32>, vector<32x128xf32>, vector<8x128xf32> -> vector<8x128xf32>
    %33 = arith.addf %31, %32 : vector<8x128xf32>
    %34 = vector.extract_strided_slice %33 {offsets = [0, 0], sizes = [8, 96], strides = [1, 1]} : vector<8x128xf32> to vector<8x96xf32>
    %35 = arith.negf %34 : vector<8x96xf32>
    %36 = math.exp %35 : vector<8x96xf32>
    %cst_22 = arith.constant 1.000000e+00 : f32
    %37 = vector.broadcast %cst_22 : f32 to vector<8x96xf32>
    %38 = arith.addf %37, %36 : vector<8x96xf32>
    %39 = arith.divf %37, %38 : vector<8x96xf32>
    %40 = vector.extract_strided_slice %39 {offsets = [0, 0], sizes = [8, 32], strides = [1, 1]} : vector<8x96xf32> to vector<8x32xf32>
    %41 = vector.extract_strided_slice %39 {offsets = [0, 32], sizes = [8, 32], strides = [1, 1]} : vector<8x96xf32> to vector<8x32xf32>
    %42 = vector.extract_strided_slice %39 {offsets = [0, 64], sizes = [8, 32], strides = [1, 1]} : vector<8x96xf32> to vector<8x32xf32>
    %43 = vector.extract_strided_slice %33 {offsets = [0, 96], sizes = [8, 32], strides = [1, 1]} : vector<8x128xf32> to vector<8x32xf32>
    %44 = math.tanh %43 : vector<8x32xf32>
    %45 = arith.mulf %41, %30 : vector<8x32xf32>
    %46 = arith.mulf %40, %44 : vector<8x32xf32>
    %47 = arith.addf %45, %46 : vector<8x32xf32>
    %48 = math.tanh %47 : vector<8x32xf32>
    %49 = arith.mulf %42, %48 : vector<8x32xf32>
    %50 = vector.extract_strided_slice %28 {offsets = [8, 0], sizes = [8, 128], strides = [1, 1]} : vector<128x128xf32> to vector<8x128xf32>
    %cst_23 = arith.constant dense<0.000000e+00> : vector<8x128xf32>
    %51 = tpu.matmul %49, %23, %cst_23 {dimension_numbers = #tpu.dot_dimension_numbers<[1], [0], [0], [1], [0, 0, 1, 1], [], []>} : vector<8x32xf32>, vector<32x128xf32>, vector<8x128xf32> -> vector<8x128xf32>
    %52 = arith.addf %50, %51 : vector<8x128xf32>
    %53 = vector.extract_strided_slice %52 {offsets = [0, 0], sizes = [8, 96], strides = [1, 1]} : vector<8x128xf32> to vector<8x96xf32>
    %54 = arith.negf %53 : vector<8x96xf32>
    %55 = math.exp %54 : vector<8x96xf32>
    %cst_24 = arith.constant 1.000000e+00 : f32
    %56 = vector.broadcast %cst_24 : f32 to vector<8x96xf32>
    %57 = arith.addf %56, %55 : vector<8x96xf32>
    %58 = arith.divf %56, %57 : vector<8x96xf32>
    %59 = vector.extract_strided_slice %58 {offsets = [0, 0], sizes = [8, 32], strides = [1, 1]} : vector<8x96xf32> to vector<8x32xf32>
    %60 = vector.extract_strided_slice %58 {offsets = [0, 32], sizes = [8, 32], strides = [1, 1]} : vector<8x96xf32> to vector<8x32xf32>
    %61 = vector.extract_strided_slice %58 {offsets = [0, 64], sizes = [8, 32], strides = [1, 1]} : vector<8x96xf32> to vector<8x32xf32>
    %62 = vector.extract_strided_slice %52 {offsets = [0, 96], sizes = [8, 32], strides = [1, 1]} : vector<8x128xf32> to vector<8x32xf32>
    %63 = math.tanh %62 : vector<8x32xf32>
    %64 = arith.mulf %60, %47 : vector<8x32xf32>
    %65 = arith.mulf %59, %63 : vector<8x32xf32>
    %66 = arith.addf %64, %65 : vector<8x32xf32>
    %67 = math.tanh %66 : vector<8x32xf32>
    %68 = arith.mulf %61, %67 : vector<8x32xf32>
    %69 = vector.extract_strided_slice %28 {offsets = [16, 0], sizes = [8, 128], strides = [1, 1]} : vector<128x128xf32> to vector<8x128xf32>
    %cst_25 = arith.constant dense<0.000000e+00> : vector<8x128xf32>
    %70 = tpu.matmul %68, %23, %cst_25 {dimension_numbers = #tpu.dot_dimension_numbers<[1], [0], [0], [1], [0, 0, 1, 1], [], []>} : vector<8x32xf32>, vector<32x128xf32>, vector<8x128xf32> -> vector<8x128xf32>
    %71 = arith.addf %69, %70 : vector<8x128xf32>
    %72 = vector.extract_strided_slice %71 {offsets = [0, 0], sizes = [8, 96], strides = [1, 1]} : vector<8x128xf32> to vector<8x96xf32>
    %73 = arith.negf %72 : vector<8x96xf32>
    %74 = math.exp %73 : vector<8x96xf32>
    %cst_26 = arith.constant 1.000000e+00 : f32
    %75 = vector.broadcast %cst_26 : f32 to vector<8x96xf32>
    %76 = arith.addf %75, %74 : vector<8x96xf32>
    %77 = arith.divf %75, %76 : vector<8x96xf32>
    %78 = vector.extract_strided_slice %77 {offsets = [0, 0], sizes = [8, 32], strides = [1, 1]} : vector<8x96xf32> to vector<8x32xf32>
    %79 = vector.extract_strided_slice %77 {offsets = [0, 32], sizes = [8, 32], strides = [1, 1]} : vector<8x96xf32> to vector<8x32xf32>
    %80 = vector.extract_strided_slice %77 {offsets = [0, 64], sizes = [8, 32], strides = [1, 1]} : vector<8x96xf32> to vector<8x32xf32>
    %81 = vector.extract_strided_slice %71 {offsets = [0, 96], sizes = [8, 32], strides = [1, 1]} : vector<8x128xf32> to vector<8x32xf32>
    %82 = math.tanh %81 : vector<8x32xf32>
    %83 = arith.mulf %79, %66 : vector<8x32xf32>
    %84 = arith.mulf %78, %82 : vector<8x32xf32>
    %85 = arith.addf %83, %84 : vector<8x32xf32>
    %86 = math.tanh %85 : vector<8x32xf32>
    %87 = arith.mulf %80, %86 : vector<8x32xf32>
    %88 = vector.extract_strided_slice %28 {offsets = [24, 0], sizes = [8, 128], strides = [1, 1]} : vector<128x128xf32> to vector<8x128xf32>
    %cst_27 = arith.constant dense<0.000000e+00> : vector<8x128xf32>
    %89 = tpu.matmul %87, %23, %cst_27 {dimension_numbers = #tpu.dot_dimension_numbers<[1], [0], [0], [1], [0, 0, 1, 1], [], []>} : vector<8x32xf32>, vector<32x128xf32>, vector<8x128xf32> -> vector<8x128xf32>
    %90 = arith.addf %88, %89 : vector<8x128xf32>
    %91 = vector.extract_strided_slice %90 {offsets = [0, 0], sizes = [8, 96], strides = [1, 1]} : vector<8x128xf32> to vector<8x96xf32>
    %92 = arith.negf %91 : vector<8x96xf32>
    %93 = math.exp %92 : vector<8x96xf32>
    %cst_28 = arith.constant 1.000000e+00 : f32
    %94 = vector.broadcast %cst_28 : f32 to vector<8x96xf32>
    %95 = arith.addf %94, %93 : vector<8x96xf32>
    %96 = arith.divf %94, %95 : vector<8x96xf32>
    %97 = vector.extract_strided_slice %96 {offsets = [0, 0], sizes = [8, 32], strides = [1, 1]} : vector<8x96xf32> to vector<8x32xf32>
    %98 = vector.extract_strided_slice %96 {offsets = [0, 32], sizes = [8, 32], strides = [1, 1]} : vector<8x96xf32> to vector<8x32xf32>
    %99 = vector.extract_strided_slice %96 {offsets = [0, 64], sizes = [8, 32], strides = [1, 1]} : vector<8x96xf32> to vector<8x32xf32>
    %100 = vector.extract_strided_slice %90 {offsets = [0, 96], sizes = [8, 32], strides = [1, 1]} : vector<8x128xf32> to vector<8x32xf32>
    %101 = math.tanh %100 : vector<8x32xf32>
    %102 = arith.mulf %98, %85 : vector<8x32xf32>
    %103 = arith.mulf %97, %101 : vector<8x32xf32>
    %104 = arith.addf %102, %103 : vector<8x32xf32>
    %105 = math.tanh %104 : vector<8x32xf32>
    %106 = arith.mulf %99, %105 : vector<8x32xf32>
    %107 = vector.extract_strided_slice %28 {offsets = [32, 0], sizes = [8, 128], strides = [1, 1]} : vector<128x128xf32> to vector<8x128xf32>
    %cst_29 = arith.constant dense<0.000000e+00> : vector<8x128xf32>
    %108 = tpu.matmul %106, %23, %cst_29 {dimension_numbers = #tpu.dot_dimension_numbers<[1], [0], [0], [1], [0, 0, 1, 1], [], []>} : vector<8x32xf32>, vector<32x128xf32>, vector<8x128xf32> -> vector<8x128xf32>
    %109 = arith.addf %107, %108 : vector<8x128xf32>
    %110 = vector.extract_strided_slice %109 {offsets = [0, 0], sizes = [8, 96], strides = [1, 1]} : vector<8x128xf32> to vector<8x96xf32>
    %111 = arith.negf %110 : vector<8x96xf32>
    %112 = math.exp %111 : vector<8x96xf32>
    %cst_30 = arith.constant 1.000000e+00 : f32
    %113 = vector.broadcast %cst_30 : f32 to vector<8x96xf32>
    %114 = arith.addf %113, %112 : vector<8x96xf32>
    %115 = arith.divf %113, %114 : vector<8x96xf32>
    %116 = vector.extract_strided_slice %115 {offsets = [0, 0], sizes = [8, 32], strides = [1, 1]} : vector<8x96xf32> to vector<8x32xf32>
    %117 = vector.extract_strided_slice %115 {offsets = [0, 32], sizes = [8, 32], strides = [1, 1]} : vector<8x96xf32> to vector<8x32xf32>
    %118 = vector.extract_strided_slice %115 {offsets = [0, 64], sizes = [8, 32], strides = [1, 1]} : vector<8x96xf32> to vector<8x32xf32>
    %119 = vector.extract_strided_slice %109 {offsets = [0, 96], sizes = [8, 32], strides = [1, 1]} : vector<8x128xf32> to vector<8x32xf32>
    %120 = math.tanh %119 : vector<8x32xf32>
    %121 = arith.mulf %117, %104 : vector<8x32xf32>
    %122 = arith.mulf %116, %120 : vector<8x32xf32>
    %123 = arith.addf %121, %122 : vector<8x32xf32>
    %124 = math.tanh %123 : vector<8x32xf32>
    %125 = arith.mulf %118, %124 : vector<8x32xf32>
    %126 = vector.extract_strided_slice %28 {offsets = [40, 0], sizes = [8, 128], strides = [1, 1]} : vector<128x128xf32> to vector<8x128xf32>
    %cst_31 = arith.constant dense<0.000000e+00> : vector<8x128xf32>
    %127 = tpu.matmul %125, %23, %cst_31 {dimension_numbers = #tpu.dot_dimension_numbers<[1], [0], [0], [1], [0, 0, 1, 1], [], []>} : vector<8x32xf32>, vector<32x128xf32>, vector<8x128xf32> -> vector<8x128xf32>
    %128 = arith.addf %126, %127 : vector<8x128xf32>
    %129 = vector.extract_strided_slice %128 {offsets = [0, 0], sizes = [8, 96], strides = [1, 1]} : vector<8x128xf32> to vector<8x96xf32>
    %130 = arith.negf %129 : vector<8x96xf32>
    %131 = math.exp %130 : vector<8x96xf32>
    %cst_32 = arith.constant 1.000000e+00 : f32
    %132 = vector.broadcast %cst_32 : f32 to vector<8x96xf32>
    %133 = arith.addf %132, %131 : vector<8x96xf32>
    %134 = arith.divf %132, %133 : vector<8x96xf32>
    %135 = vector.extract_strided_slice %134 {offsets = [0, 0], sizes = [8, 32], strides = [1, 1]} : vector<8x96xf32> to vector<8x32xf32>
    %136 = vector.extract_strided_slice %134 {offsets = [0, 32], sizes = [8, 32], strides = [1, 1]} : vector<8x96xf32> to vector<8x32xf32>
    %137 = vector.extract_strided_slice %134 {offsets = [0, 64], sizes = [8, 32], strides = [1, 1]} : vector<8x96xf32> to vector<8x32xf32>
    %138 = vector.extract_strided_slice %128 {offsets = [0, 96], sizes = [8, 32], strides = [1, 1]} : vector<8x128xf32> to vector<8x32xf32>
    %139 = math.tanh %138 : vector<8x32xf32>
    %140 = arith.mulf %136, %123 : vector<8x32xf32>
    %141 = arith.mulf %135, %139 : vector<8x32xf32>
    %142 = arith.addf %140, %141 : vector<8x32xf32>
    %143 = math.tanh %142 : vector<8x32xf32>
    %144 = arith.mulf %137, %143 : vector<8x32xf32>
    %145 = vector.extract_strided_slice %28 {offsets = [48, 0], sizes = [8, 128], strides = [1, 1]} : vector<128x128xf32> to vector<8x128xf32>
    %cst_33 = arith.constant dense<0.000000e+00> : vector<8x128xf32>
    %146 = tpu.matmul %144, %23, %cst_33 {dimension_numbers = #tpu.dot_dimension_numbers<[1], [0], [0], [1], [0, 0, 1, 1], [], []>} : vector<8x32xf32>, vector<32x128xf32>, vector<8x128xf32> -> vector<8x128xf32>
    %147 = arith.addf %145, %146 : vector<8x128xf32>
    %148 = vector.extract_strided_slice %147 {offsets = [0, 0], sizes = [8, 96], strides = [1, 1]} : vector<8x128xf32> to vector<8x96xf32>
    %149 = arith.negf %148 : vector<8x96xf32>
    %150 = math.exp %149 : vector<8x96xf32>
    %cst_34 = arith.constant 1.000000e+00 : f32
    %151 = vector.broadcast %cst_34 : f32 to vector<8x96xf32>
    %152 = arith.addf %151, %150 : vector<8x96xf32>
    %153 = arith.divf %151, %152 : vector<8x96xf32>
    %154 = vector.extract_strided_slice %153 {offsets = [0, 0], sizes = [8, 32], strides = [1, 1]} : vector<8x96xf32> to vector<8x32xf32>
    %155 = vector.extract_strided_slice %153 {offsets = [0, 32], sizes = [8, 32], strides = [1, 1]} : vector<8x96xf32> to vector<8x32xf32>
    %156 = vector.extract_strided_slice %153 {offsets = [0, 64], sizes = [8, 32], strides = [1, 1]} : vector<8x96xf32> to vector<8x32xf32>
    %157 = vector.extract_strided_slice %147 {offsets = [0, 96], sizes = [8, 32], strides = [1, 1]} : vector<8x128xf32> to vector<8x32xf32>
    %158 = math.tanh %157 : vector<8x32xf32>
    %159 = arith.mulf %155, %142 : vector<8x32xf32>
    %160 = arith.mulf %154, %158 : vector<8x32xf32>
    %161 = arith.addf %159, %160 : vector<8x32xf32>
    %162 = math.tanh %161 : vector<8x32xf32>
    %163 = arith.mulf %156, %162 : vector<8x32xf32>
    %164 = vector.extract_strided_slice %28 {offsets = [56, 0], sizes = [8, 128], strides = [1, 1]} : vector<128x128xf32> to vector<8x128xf32>
    %cst_35 = arith.constant dense<0.000000e+00> : vector<8x128xf32>
    %165 = tpu.matmul %163, %23, %cst_35 {dimension_numbers = #tpu.dot_dimension_numbers<[1], [0], [0], [1], [0, 0, 1, 1], [], []>} : vector<8x32xf32>, vector<32x128xf32>, vector<8x128xf32> -> vector<8x128xf32>
    %166 = arith.addf %164, %165 : vector<8x128xf32>
    %167 = vector.extract_strided_slice %166 {offsets = [0, 0], sizes = [8, 96], strides = [1, 1]} : vector<8x128xf32> to vector<8x96xf32>
    %168 = arith.negf %167 : vector<8x96xf32>
    %169 = math.exp %168 : vector<8x96xf32>
    %cst_36 = arith.constant 1.000000e+00 : f32
    %170 = vector.broadcast %cst_36 : f32 to vector<8x96xf32>
    %171 = arith.addf %170, %169 : vector<8x96xf32>
    %172 = arith.divf %170, %171 : vector<8x96xf32>
    %173 = vector.extract_strided_slice %172 {offsets = [0, 0], sizes = [8, 32], strides = [1, 1]} : vector<8x96xf32> to vector<8x32xf32>
    %174 = vector.extract_strided_slice %172 {offsets = [0, 32], sizes = [8, 32], strides = [1, 1]} : vector<8x96xf32> to vector<8x32xf32>
    %175 = vector.extract_strided_slice %172 {offsets = [0, 64], sizes = [8, 32], strides = [1, 1]} : vector<8x96xf32> to vector<8x32xf32>
    %176 = vector.extract_strided_slice %166 {offsets = [0, 96], sizes = [8, 32], strides = [1, 1]} : vector<8x128xf32> to vector<8x32xf32>
    %177 = math.tanh %176 : vector<8x32xf32>
    %178 = arith.mulf %174, %161 : vector<8x32xf32>
    %179 = arith.mulf %173, %177 : vector<8x32xf32>
    %180 = arith.addf %178, %179 : vector<8x32xf32>
    %181 = math.tanh %180 : vector<8x32xf32>
    %182 = arith.mulf %175, %181 : vector<8x32xf32>
    %183 = vector.extract_strided_slice %28 {offsets = [64, 0], sizes = [8, 128], strides = [1, 1]} : vector<128x128xf32> to vector<8x128xf32>
    %cst_37 = arith.constant dense<0.000000e+00> : vector<8x128xf32>
    %184 = tpu.matmul %182, %23, %cst_37 {dimension_numbers = #tpu.dot_dimension_numbers<[1], [0], [0], [1], [0, 0, 1, 1], [], []>} : vector<8x32xf32>, vector<32x128xf32>, vector<8x128xf32> -> vector<8x128xf32>
    %185 = arith.addf %183, %184 : vector<8x128xf32>
    %186 = vector.extract_strided_slice %185 {offsets = [0, 0], sizes = [8, 96], strides = [1, 1]} : vector<8x128xf32> to vector<8x96xf32>
    %187 = arith.negf %186 : vector<8x96xf32>
    %188 = math.exp %187 : vector<8x96xf32>
    %cst_38 = arith.constant 1.000000e+00 : f32
    %189 = vector.broadcast %cst_38 : f32 to vector<8x96xf32>
    %190 = arith.addf %189, %188 : vector<8x96xf32>
    %191 = arith.divf %189, %190 : vector<8x96xf32>
    %192 = vector.extract_strided_slice %191 {offsets = [0, 0], sizes = [8, 32], strides = [1, 1]} : vector<8x96xf32> to vector<8x32xf32>
    %193 = vector.extract_strided_slice %191 {offsets = [0, 32], sizes = [8, 32], strides = [1, 1]} : vector<8x96xf32> to vector<8x32xf32>
    %194 = vector.extract_strided_slice %191 {offsets = [0, 64], sizes = [8, 32], strides = [1, 1]} : vector<8x96xf32> to vector<8x32xf32>
    %195 = vector.extract_strided_slice %185 {offsets = [0, 96], sizes = [8, 32], strides = [1, 1]} : vector<8x128xf32> to vector<8x32xf32>
    %196 = math.tanh %195 : vector<8x32xf32>
    %197 = arith.mulf %193, %180 : vector<8x32xf32>
    %198 = arith.mulf %192, %196 : vector<8x32xf32>
    %199 = arith.addf %197, %198 : vector<8x32xf32>
    %200 = math.tanh %199 : vector<8x32xf32>
    %201 = arith.mulf %194, %200 : vector<8x32xf32>
    %202 = vector.extract_strided_slice %28 {offsets = [72, 0], sizes = [8, 128], strides = [1, 1]} : vector<128x128xf32> to vector<8x128xf32>
    %cst_39 = arith.constant dense<0.000000e+00> : vector<8x128xf32>
    %203 = tpu.matmul %201, %23, %cst_39 {dimension_numbers = #tpu.dot_dimension_numbers<[1], [0], [0], [1], [0, 0, 1, 1], [], []>} : vector<8x32xf32>, vector<32x128xf32>, vector<8x128xf32> -> vector<8x128xf32>
    %204 = arith.addf %202, %203 : vector<8x128xf32>
    %205 = vector.extract_strided_slice %204 {offsets = [0, 0], sizes = [8, 96], strides = [1, 1]} : vector<8x128xf32> to vector<8x96xf32>
    %206 = arith.negf %205 : vector<8x96xf32>
    %207 = math.exp %206 : vector<8x96xf32>
    %cst_40 = arith.constant 1.000000e+00 : f32
    %208 = vector.broadcast %cst_40 : f32 to vector<8x96xf32>
    %209 = arith.addf %208, %207 : vector<8x96xf32>
    %210 = arith.divf %208, %209 : vector<8x96xf32>
    %211 = vector.extract_strided_slice %210 {offsets = [0, 0], sizes = [8, 32], strides = [1, 1]} : vector<8x96xf32> to vector<8x32xf32>
    %212 = vector.extract_strided_slice %210 {offsets = [0, 32], sizes = [8, 32], strides = [1, 1]} : vector<8x96xf32> to vector<8x32xf32>
    %213 = vector.extract_strided_slice %210 {offsets = [0, 64], sizes = [8, 32], strides = [1, 1]} : vector<8x96xf32> to vector<8x32xf32>
    %214 = vector.extract_strided_slice %204 {offsets = [0, 96], sizes = [8, 32], strides = [1, 1]} : vector<8x128xf32> to vector<8x32xf32>
    %215 = math.tanh %214 : vector<8x32xf32>
    %216 = arith.mulf %212, %199 : vector<8x32xf32>
    %217 = arith.mulf %211, %215 : vector<8x32xf32>
    %218 = arith.addf %216, %217 : vector<8x32xf32>
    %219 = math.tanh %218 : vector<8x32xf32>
    %220 = arith.mulf %213, %219 : vector<8x32xf32>
    %221 = vector.extract_strided_slice %28 {offsets = [80, 0], sizes = [8, 128], strides = [1, 1]} : vector<128x128xf32> to vector<8x128xf32>
    %cst_41 = arith.constant dense<0.000000e+00> : vector<8x128xf32>
    %222 = tpu.matmul %220, %23, %cst_41 {dimension_numbers = #tpu.dot_dimension_numbers<[1], [0], [0], [1], [0, 0, 1, 1], [], []>} : vector<8x32xf32>, vector<32x128xf32>, vector<8x128xf32> -> vector<8x128xf32>
    %223 = arith.addf %221, %222 : vector<8x128xf32>
    %224 = vector.extract_strided_slice %223 {offsets = [0, 0], sizes = [8, 96], strides = [1, 1]} : vector<8x128xf32> to vector<8x96xf32>
    %225 = arith.negf %224 : vector<8x96xf32>
    %226 = math.exp %225 : vector<8x96xf32>
    %cst_42 = arith.constant 1.000000e+00 : f32
    %227 = vector.broadcast %cst_42 : f32 to vector<8x96xf32>
    %228 = arith.addf %227, %226 : vector<8x96xf32>
    %229 = arith.divf %227, %228 : vector<8x96xf32>
    %230 = vector.extract_strided_slice %229 {offsets = [0, 0], sizes = [8, 32], strides = [1, 1]} : vector<8x96xf32> to vector<8x32xf32>
    %231 = vector.extract_strided_slice %229 {offsets = [0, 32], sizes = [8, 32], strides = [1, 1]} : vector<8x96xf32> to vector<8x32xf32>
    %232 = vector.extract_strided_slice %229 {offsets = [0, 64], sizes = [8, 32], strides = [1, 1]} : vector<8x96xf32> to vector<8x32xf32>
    %233 = vector.extract_strided_slice %223 {offsets = [0, 96], sizes = [8, 32], strides = [1, 1]} : vector<8x128xf32> to vector<8x32xf32>
    %234 = math.tanh %233 : vector<8x32xf32>
    %235 = arith.mulf %231, %218 : vector<8x32xf32>
    %236 = arith.mulf %230, %234 : vector<8x32xf32>
    %237 = arith.addf %235, %236 : vector<8x32xf32>
    %238 = math.tanh %237 : vector<8x32xf32>
    %239 = arith.mulf %232, %238 : vector<8x32xf32>
    %240 = vector.extract_strided_slice %28 {offsets = [88, 0], sizes = [8, 128], strides = [1, 1]} : vector<128x128xf32> to vector<8x128xf32>
    %cst_43 = arith.constant dense<0.000000e+00> : vector<8x128xf32>
    %241 = tpu.matmul %239, %23, %cst_43 {dimension_numbers = #tpu.dot_dimension_numbers<[1], [0], [0], [1], [0, 0, 1, 1], [], []>} : vector<8x32xf32>, vector<32x128xf32>, vector<8x128xf32> -> vector<8x128xf32>
    %242 = arith.addf %240, %241 : vector<8x128xf32>
    %243 = vector.extract_strided_slice %242 {offsets = [0, 0], sizes = [8, 96], strides = [1, 1]} : vector<8x128xf32> to vector<8x96xf32>
    %244 = arith.negf %243 : vector<8x96xf32>
    %245 = math.exp %244 : vector<8x96xf32>
    %cst_44 = arith.constant 1.000000e+00 : f32
    %246 = vector.broadcast %cst_44 : f32 to vector<8x96xf32>
    %247 = arith.addf %246, %245 : vector<8x96xf32>
    %248 = arith.divf %246, %247 : vector<8x96xf32>
    %249 = vector.extract_strided_slice %248 {offsets = [0, 0], sizes = [8, 32], strides = [1, 1]} : vector<8x96xf32> to vector<8x32xf32>
    %250 = vector.extract_strided_slice %248 {offsets = [0, 32], sizes = [8, 32], strides = [1, 1]} : vector<8x96xf32> to vector<8x32xf32>
    %251 = vector.extract_strided_slice %248 {offsets = [0, 64], sizes = [8, 32], strides = [1, 1]} : vector<8x96xf32> to vector<8x32xf32>
    %252 = vector.extract_strided_slice %242 {offsets = [0, 96], sizes = [8, 32], strides = [1, 1]} : vector<8x128xf32> to vector<8x32xf32>
    %253 = math.tanh %252 : vector<8x32xf32>
    %254 = arith.mulf %250, %237 : vector<8x32xf32>
    %255 = arith.mulf %249, %253 : vector<8x32xf32>
    %256 = arith.addf %254, %255 : vector<8x32xf32>
    %257 = math.tanh %256 : vector<8x32xf32>
    %258 = arith.mulf %251, %257 : vector<8x32xf32>
    %259 = vector.extract_strided_slice %28 {offsets = [96, 0], sizes = [8, 128], strides = [1, 1]} : vector<128x128xf32> to vector<8x128xf32>
    %cst_45 = arith.constant dense<0.000000e+00> : vector<8x128xf32>
    %260 = tpu.matmul %258, %23, %cst_45 {dimension_numbers = #tpu.dot_dimension_numbers<[1], [0], [0], [1], [0, 0, 1, 1], [], []>} : vector<8x32xf32>, vector<32x128xf32>, vector<8x128xf32> -> vector<8x128xf32>
    %261 = arith.addf %259, %260 : vector<8x128xf32>
    %262 = vector.extract_strided_slice %261 {offsets = [0, 0], sizes = [8, 96], strides = [1, 1]} : vector<8x128xf32> to vector<8x96xf32>
    %263 = arith.negf %262 : vector<8x96xf32>
    %264 = math.exp %263 : vector<8x96xf32>
    %cst_46 = arith.constant 1.000000e+00 : f32
    %265 = vector.broadcast %cst_46 : f32 to vector<8x96xf32>
    %266 = arith.addf %265, %264 : vector<8x96xf32>
    %267 = arith.divf %265, %266 : vector<8x96xf32>
    %268 = vector.extract_strided_slice %267 {offsets = [0, 0], sizes = [8, 32], strides = [1, 1]} : vector<8x96xf32> to vector<8x32xf32>
    %269 = vector.extract_strided_slice %267 {offsets = [0, 32], sizes = [8, 32], strides = [1, 1]} : vector<8x96xf32> to vector<8x32xf32>
    %270 = vector.extract_strided_slice %267 {offsets = [0, 64], sizes = [8, 32], strides = [1, 1]} : vector<8x96xf32> to vector<8x32xf32>
    %271 = vector.extract_strided_slice %261 {offsets = [0, 96], sizes = [8, 32], strides = [1, 1]} : vector<8x128xf32> to vector<8x32xf32>
    %272 = math.tanh %271 : vector<8x32xf32>
    %273 = arith.mulf %269, %256 : vector<8x32xf32>
    %274 = arith.mulf %268, %272 : vector<8x32xf32>
    %275 = arith.addf %273, %274 : vector<8x32xf32>
    %276 = math.tanh %275 : vector<8x32xf32>
    %277 = arith.mulf %270, %276 : vector<8x32xf32>
    %278 = vector.extract_strided_slice %28 {offsets = [104, 0], sizes = [8, 128], strides = [1, 1]} : vector<128x128xf32> to vector<8x128xf32>
    %cst_47 = arith.constant dense<0.000000e+00> : vector<8x128xf32>
    %279 = tpu.matmul %277, %23, %cst_47 {dimension_numbers = #tpu.dot_dimension_numbers<[1], [0], [0], [1], [0, 0, 1, 1], [], []>} : vector<8x32xf32>, vector<32x128xf32>, vector<8x128xf32> -> vector<8x128xf32>
    %280 = arith.addf %278, %279 : vector<8x128xf32>
    %281 = vector.extract_strided_slice %280 {offsets = [0, 0], sizes = [8, 96], strides = [1, 1]} : vector<8x128xf32> to vector<8x96xf32>
    %282 = arith.negf %281 : vector<8x96xf32>
    %283 = math.exp %282 : vector<8x96xf32>
    %cst_48 = arith.constant 1.000000e+00 : f32
    %284 = vector.broadcast %cst_48 : f32 to vector<8x96xf32>
    %285 = arith.addf %284, %283 : vector<8x96xf32>
    %286 = arith.divf %284, %285 : vector<8x96xf32>
    %287 = vector.extract_strided_slice %286 {offsets = [0, 0], sizes = [8, 32], strides = [1, 1]} : vector<8x96xf32> to vector<8x32xf32>
    %288 = vector.extract_strided_slice %286 {offsets = [0, 32], sizes = [8, 32], strides = [1, 1]} : vector<8x96xf32> to vector<8x32xf32>
    %289 = vector.extract_strided_slice %286 {offsets = [0, 64], sizes = [8, 32], strides = [1, 1]} : vector<8x96xf32> to vector<8x32xf32>
    %290 = vector.extract_strided_slice %280 {offsets = [0, 96], sizes = [8, 32], strides = [1, 1]} : vector<8x128xf32> to vector<8x32xf32>
    %291 = math.tanh %290 : vector<8x32xf32>
    %292 = arith.mulf %288, %275 : vector<8x32xf32>
    %293 = arith.mulf %287, %291 : vector<8x32xf32>
    %294 = arith.addf %292, %293 : vector<8x32xf32>
    %295 = math.tanh %294 : vector<8x32xf32>
    %296 = arith.mulf %289, %295 : vector<8x32xf32>
    %297 = vector.extract_strided_slice %28 {offsets = [112, 0], sizes = [8, 128], strides = [1, 1]} : vector<128x128xf32> to vector<8x128xf32>
    %cst_49 = arith.constant dense<0.000000e+00> : vector<8x128xf32>
    %298 = tpu.matmul %296, %23, %cst_49 {dimension_numbers = #tpu.dot_dimension_numbers<[1], [0], [0], [1], [0, 0, 1, 1], [], []>} : vector<8x32xf32>, vector<32x128xf32>, vector<8x128xf32> -> vector<8x128xf32>
    %299 = arith.addf %297, %298 : vector<8x128xf32>
    %300 = vector.extract_strided_slice %299 {offsets = [0, 0], sizes = [8, 96], strides = [1, 1]} : vector<8x128xf32> to vector<8x96xf32>
    %301 = arith.negf %300 : vector<8x96xf32>
    %302 = math.exp %301 : vector<8x96xf32>
    %cst_50 = arith.constant 1.000000e+00 : f32
    %303 = vector.broadcast %cst_50 : f32 to vector<8x96xf32>
    %304 = arith.addf %303, %302 : vector<8x96xf32>
    %305 = arith.divf %303, %304 : vector<8x96xf32>
    %306 = vector.extract_strided_slice %305 {offsets = [0, 0], sizes = [8, 32], strides = [1, 1]} : vector<8x96xf32> to vector<8x32xf32>
    %307 = vector.extract_strided_slice %305 {offsets = [0, 32], sizes = [8, 32], strides = [1, 1]} : vector<8x96xf32> to vector<8x32xf32>
    %308 = vector.extract_strided_slice %305 {offsets = [0, 64], sizes = [8, 32], strides = [1, 1]} : vector<8x96xf32> to vector<8x32xf32>
    %309 = vector.extract_strided_slice %299 {offsets = [0, 96], sizes = [8, 32], strides = [1, 1]} : vector<8x128xf32> to vector<8x32xf32>
    %310 = math.tanh %309 : vector<8x32xf32>
    %311 = arith.mulf %307, %294 : vector<8x32xf32>
    %312 = arith.mulf %306, %310 : vector<8x32xf32>
    %313 = arith.addf %311, %312 : vector<8x32xf32>
    %314 = math.tanh %313 : vector<8x32xf32>
    %315 = arith.mulf %308, %314 : vector<8x32xf32>
    %316 = vector.extract_strided_slice %28 {offsets = [120, 0], sizes = [8, 128], strides = [1, 1]} : vector<128x128xf32> to vector<8x128xf32>
    %cst_51 = arith.constant dense<0.000000e+00> : vector<8x128xf32>
    %317 = tpu.matmul %315, %23, %cst_51 {dimension_numbers = #tpu.dot_dimension_numbers<[1], [0], [0], [1], [0, 0, 1, 1], [], []>} : vector<8x32xf32>, vector<32x128xf32>, vector<8x128xf32> -> vector<8x128xf32>
    %318 = arith.addf %316, %317 : vector<8x128xf32>
    %319 = vector.extract_strided_slice %318 {offsets = [0, 0], sizes = [8, 96], strides = [1, 1]} : vector<8x128xf32> to vector<8x96xf32>
    %320 = arith.negf %319 : vector<8x96xf32>
    %321 = math.exp %320 : vector<8x96xf32>
    %cst_52 = arith.constant 1.000000e+00 : f32
    %322 = vector.broadcast %cst_52 : f32 to vector<8x96xf32>
    %323 = arith.addf %322, %321 : vector<8x96xf32>
    %324 = arith.divf %322, %323 : vector<8x96xf32>
    %325 = vector.extract_strided_slice %324 {offsets = [0, 0], sizes = [8, 32], strides = [1, 1]} : vector<8x96xf32> to vector<8x32xf32>
    %326 = vector.extract_strided_slice %324 {offsets = [0, 32], sizes = [8, 32], strides = [1, 1]} : vector<8x96xf32> to vector<8x32xf32>
    %327 = vector.extract_strided_slice %324 {offsets = [0, 64], sizes = [8, 32], strides = [1, 1]} : vector<8x96xf32> to vector<8x32xf32>
    %328 = vector.extract_strided_slice %318 {offsets = [0, 96], sizes = [8, 32], strides = [1, 1]} : vector<8x128xf32> to vector<8x32xf32>
    %329 = math.tanh %328 : vector<8x32xf32>
    %330 = arith.mulf %326, %313 : vector<8x32xf32>
    %331 = arith.mulf %325, %329 : vector<8x32xf32>
    %332 = arith.addf %330, %331 : vector<8x32xf32>
    %333 = math.tanh %332 : vector<8x32xf32>
    %334 = arith.mulf %327, %333 : vector<8x32xf32>
    %c240 = arith.constant 240 : index
    %c0_53 = arith.constant 0 : index
    %335 = vector.load %arg2[%c240, %c0_53] : memref<416x128xf32, #tpu.memory_space<vmem>>, vector<64x64xf32>
    %cst_54 = arith.constant dense<0.000000e+00> : vector<8x64xf32>
    %336 = tpu.matmul %21, %335, %cst_54 {dimension_numbers = #tpu.dot_dimension_numbers<[1], [0], [0], [1], [0, 0, 1, 1], [], []>} : vector<8x64xf32>, vector<64x64xf32>, vector<8x64xf32> -> vector<8x64xf32>
    %c400 = arith.constant 400 : index
    %c0_55 = arith.constant 0 : index
    %337 = vector.load %arg2[%c400, %c0_55] : memref<416x128xf32, #tpu.memory_space<vmem>>, vector<1x64xf32>
    %338 = vector.broadcast %337 : vector<1x64xf32> to vector<8x64xf32>
    %339 = arith.addf %336, %338 : vector<8x64xf32>
    %c304 = arith.constant 304 : index
    %c64 = arith.constant 64 : index
    %340 = vector.load %arg2[%c304, %c64] : memref<416x128xf32, #tpu.memory_space<vmem>>, vector<32x32xf32>
    %cst_56 = arith.constant dense<0.000000e+00> : vector<8x32xf32>
    %341 = tpu.matmul %334, %340, %cst_56 {dimension_numbers = #tpu.dot_dimension_numbers<[1], [0], [0], [1], [0, 0, 1, 1], [], []>} : vector<8x32xf32>, vector<32x32xf32>, vector<8x32xf32> -> vector<8x32xf32>
    %c400_57 = arith.constant 400 : index
    %c64_58 = arith.constant 64 : index
    %342 = vector.load %arg2[%c400_57, %c64_58] : memref<416x128xf32, #tpu.memory_space<vmem>>, vector<1x32xf32>
    %343 = vector.broadcast %342 : vector<1x32xf32> to vector<8x32xf32>
    %344 = arith.addf %341, %343 : vector<8x32xf32>
    %345 = vector.extract_strided_slice %339 {offsets = [0, 0], sizes = [8, 32], strides = [1, 1]} : vector<8x64xf32> to vector<8x32xf32>
    %346 = vector.extract_strided_slice %339 {offsets = [0, 32], sizes = [8, 32], strides = [1, 1]} : vector<8x64xf32> to vector<8x32xf32>
    %347 = arith.mulf %345, %346 : vector<8x32xf32>
    %348 = arith.mulf %347, %344 : vector<8x32xf32>
    %c336 = arith.constant 336 : index
    %c0_59 = arith.constant 0 : index
    %349 = vector.load %arg2[%c336, %c0_59] : memref<416x128xf32, #tpu.memory_space<vmem>>, vector<32x8xf32>
    %cst_60 = arith.constant dense<0.000000e+00> : vector<8x8xf32>
    %350 = tpu.matmul %348, %349, %cst_60 {dimension_numbers = #tpu.dot_dimension_numbers<[1], [0], [0], [1], [0, 0, 1, 1], [], []>} : vector<8x32xf32>, vector<32x8xf32>, vector<8x8xf32> -> vector<8x8xf32>
    %c408 = arith.constant 408 : index
    %c0_61 = arith.constant 0 : index
    %351 = vector.load %arg2[%c408, %c0_61] : memref<416x128xf32, #tpu.memory_space<vmem>>, vector<1x8xf32>
    %352 = vector.broadcast %351 : vector<1x8xf32> to vector<8x8xf32>
    %353 = arith.addf %350, %352 : vector<8x8xf32>
    %c0_62 = arith.constant 0 : index
    %c0_63 = arith.constant 0 : index
    %354 = vector.load %arg3[%c0_62, %c0_63] : memref<8x8xf32, #tpu.memory_space<vmem>>, vector<8x8xf32>
    tpu.vector_store %arg3[%c0_62, %c0_63], %353 {strides = array<i32>} : memref<8x8xf32, #tpu.memory_space<vmem>>, vector<8x8xf32>,
    return
  }
}

</mosaic_0001>

<llo_original>
// kernel: lmf_forward.1
$region0: #{lmf_forward.1}
  #allocation0 [shape = 'u32[]', space=smem, size = 0x4, offset = 0x4, fixed_abs, tag = 'smem constant byte address 0x4 - core index']
  #allocation1 [shape = 'u32[72,128]{1,0:T(1,128)}', space=vmem, size = 0x9000, scoped, tag = 'internal scratch']
  %s0 = inlined_call_operand.vmem [shape: f32[128,32], index: 0, kind: input, shape index: {}]
  %s1 = inlined_call_operand.vmem [shape: f32[8,48], index: 1, kind: input, shape index: {}]
  %s2 = inlined_call_operand.hbm [shape: f32[416,128], index: 2, kind: input, shape index: {}]
  %s3 = inlined_call_operand.vmem [shape: f32[8,8], index: 3, kind: output, shape index: {}]
  %s4 = sld [smem:[#allocation0]]
  $region26: #{lmf_forward.1} parent=0
    _
  %s6 = ssub.s32 1, %s4
  %s7 = scalar_select 0, %s6, %s4
  $region1: #{lmf_forward.1} parent=0
    #allocation2 [shape = 'u8[212992]{0}', space=vmem, size = 0x34000, scoped, tag = 'input window, operand 2, single buffered']
    #allocation3 [shape = 's32[1]{0}', space=sflag, size = 0x4, scoped, tag = 'scoped memory for lmf_forward.1']
    %8 = vsyncpa [#allocation3], 0
    // Predicated region
    $region2: #{lmf_forward.1} parent=1 // pred_check
      _
    $region3: #{lmf_forward.1} parent=1 // pred_check_branch
      %10 = sbr.rel (0) target = $region5
    $region4: #{lmf_forward.1} parent=1 // pred_region
      _
    $region5: #{lmf_forward.1} parent=1 // pred_fallthru
      _
    // Predicated region
    $region6: #{lmf_forward.1} parent=1 // pred_check
      _
    $region7: #{lmf_forward.1} parent=1 // pred_check_branch
      %12 = sbr.rel (0) target = $region9
    $region8: #{lmf_forward.1} parent=1 // pred_region
      _
    $region9: #{lmf_forward.1} parent=1 // pred_fallthru
      _
    // Predicated region
    $region10: #{lmf_forward.1} parent=1 // pred_check
      _
    $region11: #{lmf_forward.1} parent=1 // pred_check_branch
      %14 = sbr.rel (0) target = $region13
    $region12: #{lmf_forward.1} parent=1 // pred_region
      %16 = vsyncadd [#allocation3], 0
      %s17 = sshll.u32 %s2, 4
      %s18 = int_to_ptr.hbm [resolvable:$true] %s17
      %s19 = sshll.u32 [#allocation2], 4
      %s20 = int_to_ptr.vmem [resolvable:$true] %s19
      %25 = dma.hbm_to_vmem [thread:$0]  %s18, 6656, %s20, [#allocation3], 128, 128, 8
    $region13: #{lmf_forward.1} parent=1 // pred_fallthru
      _
    // Predicated region
    $region14: #{lmf_forward.1} parent=1 // pred_check
      _
    $region15: #{lmf_forward.1} parent=1 // pred_check_branch
      %27 = sbr.rel (0) target = $region17
    $region16: #{lmf_forward.1} parent=1 // pred_region
      %29 = dma.done [#allocation3], 6656
    $region17: #{lmf_forward.1} parent=1 // pred_fallthru
      _
    %v30 = vld [vmem:[%s1] sm:$0xff]
    %v31 = vld [vmem:[#allocation2] sm:$0xff]
    %v32 = vld [vmem:[#allocation2 + $0x8] sm:$0xff]
    %v33 = vld [vmem:[#allocation2 + $0x10] sm:$0xff]
    %v34 = vld [vmem:[#allocation2 + $0x18] sm:$0xff]
    %v35 = vld [vmem:[#allocation2 + $0x20] sm:$0xff]
    %v36 = vld [vmem:[#allocation2 + $0x28] sm:$0xff]
    %v37 = vld [vmem:[#allocation2 + $0x170] sm:$0x1]
    %v38 = vperm.slane %v37, 0
    %vm39 = vcmask 392192
    %v41 = vsel %vm39, %v30, 0
    %43 = vmatpush.msra.mxu0 0.0
    %44 = vmatpush.msra.mxu0 0.0
    %45 = vmatpush.msra.mxu0 0.0
    %46 = vmatpush.msra.mxu0 0.0
    %47 = vmatpush.msra.mxu0 0.0
    %48 = vmatpush.msra.mxu0 0.0
    %49 = vmatpush.msra.mxu0 0.0
    %50 = vmatpush.msra.mxu0 0.0
    %51 = vmatpush.msra.mxu0 0.0
    %52 = vmatpush.msra.mxu0 0.0
    %53 = vmatpush.msra.mxu0 %v36
    %54 = vmatpush.msra.mxu0 %v35
    %55 = vmatpush.msra.mxu0 %v34
    %56 = vmatpush.msra.mxu0 %v33
    %57 = vmatpush.msra.mxu0 %v32
    %58 = vmatpush.msra.mxu0 %v31
    %59 = vmatmul.f32.gmra.mxu0 %v41
    %v60 = vpop.f32.mrf.mxu0
    %v61 = vadd.f32 %v38, %v60
    %62 = vdwg.mxu0
    %v63 = vmax.f32 %v61, 0.0
    %v64 = vld [vmem:[#allocation2 + $0x30] sm:$0xff]
    %v65 = vld [vmem:[#allocation2 + $0x38] sm:$0xff]
    %v66 = vld [vmem:[#allocation2 + $0x40] sm:$0xff]
    %v67 = vld [vmem:[#allocation2 + $0x48] sm:$0xff]
    %v68 = vld [vmem:[#allocation2 + $0x50] sm:$0xff]
    %v69 = vld [vmem:[#allocation2 + $0x58] sm:$0xff]
    %v70 = vld [vmem:[#allocation2 + $0x60] sm:$0xff]
    %v71 = vld [vmem:[#allocation2 + $0x68] sm:$0xff]
    %v72 = vld [vmem:[#allocation2 + $0x178] sm:$0x1]
    %v73 = vperm.slane %v72, 0
    %vm74 = vcmask 523264
    %v76 = vsel %vm74, %v63, 0
    %78 = vmatpush.msra.mxu0 0.0
    %79 = vmatpush.msra.mxu0 0.0
    %80 = vmatpush.msra.mxu0 0.0
    %81 = vmatpush.msra.mxu0 0.0
    %82 = vmatpush.msra.mxu0 0.0
    %83 = vmatpush.msra.mxu0 0.0
    %84 = vmatpush.msra.mxu0 0.0
    %85 = vmatpush.msra.mxu0 0.0
    %86 = vmatpush.msra.mxu0 %v71
    %87 = vmatpush.msra.mxu0 %v70
    %88 = vmatpush.msra.mxu0 %v69
    %89 = vmatpush.msra.mxu0 %v68
    %90 = vmatpush.msra.mxu0 %v67
    %91 = vmatpush.msra.mxu0 %v66
    %92 = vmatpush.msra.mxu0 %v65
    %93 = vmatpush.msra.mxu0 %v64
    %94 = vmatmul.f32.gmra.mxu0 %v76
    %v95 = vpop.f32.mrf.mxu0
    %v96 = vadd.f32 %v73, %v95
    %97 = vdwg.mxu0
    %v98 = vmax.f32 %v96, 0.0
    %v99 = vld [vmem:[#allocation2 + $0x70] sm:$0xff]
    %v100 = vld [vmem:[#allocation2 + $0x78] sm:$0xff]
    %v101 = vld [vmem:[#allocation2 + $0x80] sm:$0xff]
    %v102 = vld [vmem:[#allocation2 + $0x88] sm:$0xff]
    %v103 = vld [vmem:[#allocation2 + $0x90] sm:$0xff]
    %v104 = vld [vmem:[#allocation2 + $0x98] sm:$0xff]
    %v105 = vld [vmem:[#allocation2 + $0xa0] sm:$0xff]
    %v106 = vld [vmem:[#allocation2 + $0xa8] sm:$0xff]
    %v107 = vld [vmem:[#allocation2 + $0x180] sm:$0x1]
    %v108 = vperm.slane %v107, 0
    %v110 = vsel %vm74, %v98, 0
    %112 = vmatpush.msra.mxu0 0.0
    %113 = vmatpush.msra.mxu0 0.0
    %114 = vmatpush.msra.mxu0 0.0
    %115 = vmatpush.msra.mxu0 0.0
    %116 = vmatpush.msra.mxu0 0.0
    %117 = vmatpush.msra.mxu0 0.0
    %118 = vmatpush.msra.mxu0 0.0
    %119 = vmatpush.msra.mxu0 0.0
    %120 = vmatpush.msra.mxu0 %v106
    %121 = vmatpush.msra.mxu0 %v105
    %122 = vmatpush.msra.mxu0 %v104
    %123 = vmatpush.msra.mxu0 %v103
    %124 = vmatpush.msra.mxu0 %v102
    %125 = vmatpush.msra.mxu0 %v101
    %126 = vmatpush.msra.mxu0 %v100
    %127 = vmatpush.msra.mxu0 %v99
    %128 = vmatmul.f32.gmra.mxu0 %v110
    %v129 = vpop.f32.mrf.mxu0
    %v130 = vadd.f32 %v108, %v129
    %131 = vdwg.mxu0
    %v132 = vmax.f32 %v130, 0.0
    %v133 = vld [vmem:[#allocation2 + $0xb0] sm:$0xff]
    %v134 = vld [vmem:[#allocation2 + $0xb8] sm:$0xff]
    %v135 = vld [vmem:[#allocation2 + $0xc0] sm:$0xff]
    %v136 = vld [vmem:[#allocation2 + $0xc8] sm:$0xff]
    %v137 = vld [vmem:[#allocation2 + $0xd0] sm:$0xff]
    %v138 = vld [vmem:[#allocation2 + $0xd8] sm:$0xff]
    %v139 = vld [vmem:[#allocation2 + $0xe0] sm:$0xff]
    %v140 = vld [vmem:[#allocation2 + $0xe8] sm:$0xff]
    %v141 = vld [vmem:[#allocation2 + $0x188] sm:$0x1]
    %v142 = vld [vmem:[%s0] sm:$0xff]
    %v143 = vld [vmem:[%s0 + $0x8] sm:$0xff]
    %v144 = vld [vmem:[%s0 + $0x10] sm:$0xff]
    %v145 = vld [vmem:[%s0 + $0x18] sm:$0xff]
    %v146 = vld [vmem:[%s0 + $0x20] sm:$0xff]
    %v147 = vld [vmem:[%s0 + $0x28] sm:$0xff]
    %v148 = vld [vmem:[%s0 + $0x30] sm:$0xff]
    %v149 = vld [vmem:[%s0 + $0x38] sm:$0xff]
    %v150 = vld [vmem:[%s0 + $0x40] sm:$0xff]
    %v151 = vld [vmem:[%s0 + $0x48] sm:$0xff]
    %v152 = vld [vmem:[%s0 + $0x50] sm:$0xff]
    %v153 = vld [vmem:[%s0 + $0x58] sm:$0xff]
    %v154 = vld [vmem:[%s0 + $0x60] sm:$0xff]
    %v155 = vld [vmem:[%s0 + $0x68] sm:$0xff]
    %v156 = vld [vmem:[%s0 + $0x70] sm:$0xff]
    %v157 = vld [vmem:[%s0 + $0x78] sm:$0xff]
    %v158 = vperm.slane %v141, 0
    %vm159 = vcmask 261120
    %v161 = vsel %vm159, %v142, 0
    %v164 = vsel %vm159, %v143, 0
    %v167 = vsel %vm159, %v144, 0
    %v170 = vsel %vm159, %v145, 0
    %v173 = vsel %vm159, %v146, 0
    %v176 = vsel %vm159, %v147, 0
    %v179 = vsel %vm159, %v148, 0
    %v182 = vsel %vm159, %v149, 0
    %v185 = vsel %vm159, %v150, 0
    %v188 = vsel %vm159, %v151, 0
    %v191 = vsel %vm159, %v152, 0
    %v194 = vsel %vm159, %v153, 0
    %v197 = vsel %vm159, %v154, 0
    %v200 = vsel %vm159, %v155, 0
    %v203 = vsel %vm159, %v156, 0
    %v206 = vsel %vm159, %v157, 0
    %208 = vmatpush.msra.mxu0 0.0
    %209 = vmatpush.msra.mxu0 0.0
    %210 = vmatpush.msra.mxu0 0.0
    %211 = vmatpush.msra.mxu0 0.0
    %212 = vmatpush.msra.mxu0 0.0
    %213 = vmatpush.msra.mxu0 0.0
    %214 = vmatpush.msra.mxu0 0.0
    %215 = vmatpush.msra.mxu0 0.0
    %216 = vmatpush.msra.mxu0 0.0
    %217 = vmatpush.msra.mxu0 0.0
    %218 = vmatpush.msra.mxu0 0.0
    %219 = vmatpush.msra.mxu0 0.0
    %220 = vmatpush.msra.mxu0 %v136
    %221 = vmatpush.msra.mxu0 %v135
    %222 = vmatpush.msra.mxu0 %v134
    %223 = vmatpush.msra.mxu0 %v133
    %224 = vmatmul.f32.gmra.mxu0 %v161
    %v225 = vpop.f32.mrf.mxu0
    %v226 = vadd.f32 %v158, %v225
    %227 = vmatmul.f32.gmra.mxu0 %v164
    %v228 = vpop.f32.mrf.mxu0
    %v229 = vadd.f32 %v158, %v228
    %230 = vmatmul.f32.gmra.mxu0 %v167
    %v231 = vpop.f32.mrf.mxu0
    %v232 = vadd.f32 %v158, %v231
    %233 = vmatmul.f32.gmra.mxu0 %v170
    %v234 = vpop.f32.mrf.mxu0
    %v235 = vadd.f32 %v158, %v234
    %236 = vmatmul.f32.gmra.mxu0 %v173
    %v237 = vpop.f32.mrf.mxu0
    %v238 = vadd.f32 %v158, %v237
    %239 = vmatmul.f32.gmra.mxu0 %v176
    %v240 = vpop.f32.mrf.mxu0
    %v241 = vadd.f32 %v158, %v240
    %242 = vmatmul.f32.gmra.mxu0 %v179
    %v243 = vpop.f32.mrf.mxu0
    %v244 = vadd.f32 %v158, %v243
    %245 = vmatmul.f32.gmra.mxu0 %v182
    %v246 = vpop.f32.mrf.mxu0
    %v247 = vadd.f32 %v158, %v246
    %248 = vmatmul.f32.gmra.mxu0 %v185
    %v249 = vpop.f32.mrf.mxu0
    %v250 = vadd.f32 %v158, %v249
    %251 = vmatmul.f32.gmra.mxu0 %v188
    %v252 = vpop.f32.mrf.mxu0
    %v253 = vadd.f32 %v158, %v252
    %254 = vmatmul.f32.gmra.mxu0 %v191
    %v255 = vpop.f32.mrf.mxu0
    %v256 = vadd.f32 %v158, %v255
    %257 = vmatmul.f32.gmra.mxu0 %v194
    %v258 = vpop.f32.mrf.mxu0
    %v259 = vadd.f32 %v158, %v258
    %260 = vmatmul.f32.gmra.mxu0 %v197
    %v261 = vpop.f32.mrf.mxu0
    %v262 = vadd.f32 %v158, %v261
    %263 = vmatmul.f32.gmra.mxu0 %v200
    %v264 = vpop.f32.mrf.mxu0
    %v265 = vadd.f32 %v158, %v264
    %266 = vmatmul.f32.gmra.mxu0 %v203
    %v267 = vpop.f32.mrf.mxu0
    %v268 = vadd.f32 %v158, %v267
    %269 = vmatmul.f32.gmra.mxu0 %v206
    %v270 = vpop.f32.mrf.mxu0
    %v271 = vadd.f32 %v158, %v270
    %272 = vdwg.mxu0
    %v274 = vsel %vm159, 0.0, 0
    %276 = vmatpush.msra.mxu0 0.0
    %277 = vmatpush.msra.mxu0 0.0
    %278 = vmatpush.msra.mxu0 0.0
    %279 = vmatpush.msra.mxu0 0.0
    %280 = vmatpush.msra.mxu0 0.0
    %281 = vmatpush.msra.mxu0 0.0
    %282 = vmatpush.msra.mxu0 0.0
    %283 = vmatpush.msra.mxu0 0.0
    %284 = vmatpush.msra.mxu0 0.0
    %285 = vmatpush.msra.mxu0 0.0
    %286 = vmatpush.msra.mxu0 0.0
    %287 = vmatpush.msra.mxu0 0.0
    %288 = vmatpush.msra.mxu0 %v140
    %289 = vmatpush.msra.mxu0 %v139
    %290 = vmatpush.msra.mxu0 %v138
    %291 = vmatpush.msra.mxu0 %v137
    %292 = vmatmul.f32.gmra.mxu0 %v274
    %v293 = vpop.f32.mrf.mxu0
    %v294 = vadd.f32 0.0, %v293
    %295 = vdwg.mxu0
    %v296 = vadd.f32 %v226, %v294
    %v297 = vxor.u32 %v296, 2147483648
    %v298 = vmul.f32 %v297, 1.442695
    %v299 = vpow.pop %v298
    %v300 = vadd.f32 %v299, 1.0
    %v301 = vrcp.pop %v300
    %v302 = vmul.f32 %v300, %v301
    %v303 = vsub.f32 1.0, %v302
    %v304 = vmul.f32 %v301, %v303
    %v305 = vadd.f32 %v301, %v304
    %vm306 = vweird.f32 %v300
    %vm307 = vweird.f32 %v301
    %vm308 = vmor %vm306, %vm307
    %v309 = vsel %vm308, %v301, %v305
    %v310 = vand.u32 2147483647, %v300
    %vm311 = vcmp.eq.f32.partialorder %v310, 8.507059e+37
    %v312 = vand.u32 %v300, 2147483648
    %v313 = vor.u32 1.1754944e-38, %v312
    %v314 = vsel %vm311, %v313, %v309
    %v315 = vmul.f32 1.0, %v314
    %v316 = vtanh.pop %v296
    %v317 = vmul.f32 %v315, 0.0
    %319 = vrot.lane.b32.xlu0 %v316, 32
    %v320 = vpop.permute.xlu0 %319
    %v322 = vmul.f32 %v315, %v320
    %324 = vrot.lane.b32.xlu0 %v322, 32
    %v325 = vpop.permute.xlu0 %324
    %v327 = vadd.f32 %v317, %v325
    %v328 = vtanh.pop %v327
    %330 = vrot.lane.b32.xlu0 %v328, 32
    %v331 = vpop.permute.xlu0 %330
    %v333 = vmul.f32 %v315, %v331
    %335 = vrot.lane.b32.xlu0 %v333, 64
    %v336 = vpop.permute.xlu0 %335
    %v337 = vsel %vm159, %v336, 0
    %339 = vmatpush.msra.mxu0 0.0
    %340 = vmatpush.msra.mxu0 0.0
    %341 = vmatpush.msra.mxu0 0.0
    %342 = vmatpush.msra.mxu0 0.0
    %343 = vmatpush.msra.mxu0 0.0
    %344 = vmatpush.msra.mxu0 0.0
    %345 = vmatpush.msra.mxu0 0.0
    %346 = vmatpush.msra.mxu0 0.0
    %347 = vmatpush.msra.mxu0 0.0
    %348 = vmatpush.msra.mxu0 0.0
    %349 = vmatpush.msra.mxu0 0.0
    %350 = vmatpush.msra.mxu0 0.0
    %351 = vmatpush.msra.mxu0 %v140
    %352 = vmatpush.msra.mxu0 %v139
    %353 = vmatpush.msra.mxu0 %v138
    %354 = vmatpush.msra.mxu0 %v137
    %355 = vmatmul.f32.gmra.mxu0 %v337
    %v356 = vpop.f32.mrf.mxu0
    %v357 = vadd.f32 0.0, %v356
    %358 = vdwg.mxu0
    %v359 = vadd.f32 %v229, %v357
    %v360 = vxor.u32 %v359, 2147483648
    %v361 = vmul.f32 %v360, 1.442695
    %v362 = vpow.pop %v361
    %v363 = vadd.f32 %v362, 1.0
    %v364 = vrcp.pop %v363
    %v365 = vmul.f32 %v363, %v364
    %v366 = vsub.f32 1.0, %v365
    %v367 = vmul.f32 %v364, %v366
    %v368 = vadd.f32 %v364, %v367
    %vm369 = vweird.f32 %v363
    %vm370 = vweird.f32 %v364
    %vm371 = vmor %vm369, %vm370
    %v372 = vsel %vm371, %v364, %v368
    %v373 = vand.u32 2147483647, %v363
    %vm374 = vcmp.eq.f32.partialorder %v373, 8.507059e+37
    %v375 = vand.u32 %v363, 2147483648
    %v376 = vor.u32 1.1754944e-38, %v375
    %v377 = vsel %vm374, %v376, %v372
    %v378 = vmul.f32 1.0, %v377
    %v379 = vtanh.pop %v359
    %v380 = vmul.f32 %v378, %v327
    %382 = vrot.lane.b32.xlu0 %v379, 32
    %v383 = vpop.permute.xlu0 %382
    %v385 = vmul.f32 %v378, %v383
    %387 = vrot.lane.b32.xlu0 %v385, 32
    %v388 = vpop.permute.xlu0 %387
    %v390 = vadd.f32 %v380, %v388
    %v391 = vtanh.pop %v390
    %393 = vrot.lane.b32.xlu0 %v391, 32
    %v394 = vpop.permute.xlu0 %393
    %v396 = vmul.f32 %v378, %v394
    %398 = vrot.lane.b32.xlu0 %v396, 64
    %v399 = vpop.permute.xlu0 %398
    %v400 = vsel %vm159, %v399, 0
    %402 = vmatpush.msra.mxu0 0.0
    %403 = vmatpush.msra.mxu0 0.0
    %404 = vmatpush.msra.mxu0 0.0
    %405 = vmatpush.msra.mxu0 0.0
    %406 = vmatpush.msra.mxu0 0.0
    %407 = vmatpush.msra.mxu0 0.0
    %408 = vmatpush.msra.mxu0 0.0
    %409 = vmatpush.msra.mxu0 0.0
    %410 = vmatpush.msra.mxu0 0.0
    %411 = vmatpush.msra.mxu0 0.0
    %412 = vmatpush.msra.mxu0 0.0
    %413 = vmatpush.msra.mxu0 0.0
    %414 = vmatpush.msra.mxu0 %v140
    %415 = vmatpush.msra.mxu0 %v139
    %416 = vmatpush.msra.mxu0 %v138
    %417 = vmatpush.msra.mxu0 %v137
    %418 = vmatmul.f32.gmra.mxu0 %v400
    %v419 = vpop.f32.mrf.mxu0
    %v420 = vadd.f32 0.0, %v419
    %421 = vdwg.mxu0
    %v422 = vadd.f32 %v232, %v420
    %v423 = vxor.u32 %v422, 2147483648
    %v424 = vmul.f32 %v423, 1.442695
    %v425 = vpow.pop %v424
    %v426 = vadd.f32 %v425, 1.0
    %v427 = vrcp.pop %v426
    %v428 = vmul.f32 %v426, %v427
    %v429 = vsub.f32 1.0, %v428
    %v430 = vmul.f32 %v427, %v429
    %v431 = vadd.f32 %v427, %v430
    %vm432 = vweird.f32 %v426
    %vm433 = vweird.f32 %v427
    %vm434 = vmor %vm432, %vm433
    %v435 = vsel %vm434, %v427, %v431
    %v436 = vand.u32 2147483647, %v426
    %vm437 = vcmp.eq.f32.partialorder %v436, 8.507059e+37
    %v438 = vand.u32 %v426, 2147483648
    %v439 = vor.u32 1.1754944e-38, %v438
    %v440 = vsel %vm437, %v439, %v435
    %v441 = vmul.f32 1.0, %v440
    %v442 = vtanh.pop %v422
    %v443 = vmul.f32 %v441, %v390
    %445 = vrot.lane.b32.xlu0 %v442, 32
    %v446 = vpop.permute.xlu0 %445
    %v448 = vmul.f32 %v441, %v446
    %450 = vrot.lane.b32.xlu0 %v448, 32
    %v451 = vpop.permute.xlu0 %450
    %v453 = vadd.f32 %v443, %v451
    %v454 = vtanh.pop %v453
    %456 = vrot.lane.b32.xlu0 %v454, 32
    %v457 = vpop.permute.xlu0 %456
    %v459 = vmul.f32 %v441, %v457
    %461 = vrot.lane.b32.xlu0 %v459, 64
    %v462 = vpop.permute.xlu0 %461
    %v463 = vsel %vm159, %v462, 0
    %465 = vmatpush.msra.mxu0 0.0
    %466 = vmatpush.msra.mxu0 0.0
    %467 = vmatpush.msra.mxu0 0.0
    %468 = vmatpush.msra.mxu0 0.0
    %469 = vmatpush.msra.mxu0 0.0
    %470 = vmatpush.msra.mxu0 0.0
    %471 = vmatpush.msra.mxu0 0.0
    %472 = vmatpush.msra.mxu0 0.0
    %473 = vmatpush.msra.mxu0 0.0
    %474 = vmatpush.msra.mxu0 0.0
    %475 = vmatpush.msra.mxu0 0.0
    %476 = vmatpush.msra.mxu0 0.0
    %477 = vmatpush.msra.mxu0 %v140
    %478 = vmatpush.msra.mxu0 %v139
    %479 = vmatpush.msra.mxu0 %v138
    %480 = vmatpush.msra.mxu0 %v137
    %481 = vmatmul.f32.gmra.mxu0 %v463
    %v482 = vpop.f32.mrf.mxu0
    %v483 = vadd.f32 0.0, %v482
    %484 = vdwg.mxu0
    %v485 = vadd.f32 %v235, %v483
    %v486 = vxor.u32 %v485, 2147483648
    %v487 = vmul.f32 %v486, 1.442695
    %v488 = vpow.pop %v487
    %v489 = vadd.f32 %v488, 1.0
    %v490 = vrcp.pop %v489
    %v491 = vmul.f32 %v489, %v490
    %v492 = vsub.f32 1.0, %v491
    %v493 = vmul.f32 %v490, %v492
    %v494 = vadd.f32 %v490, %v493
    %vm495 = vweird.f32 %v489
    %vm496 = vweird.f32 %v490
    %vm497 = vmor %vm495, %vm496
    %v498 = vsel %vm497, %v490, %v494
    %v499 = vand.u32 2147483647, %v489
    %vm500 = vcmp.eq.f32.partialorder %v499, 8.507059e+37
    %v501 = vand.u32 %v489, 2147483648
    %v502 = vor.u32 1.1754944e-38, %v501
    %v503 = vsel %vm500, %v502, %v498
    %v504 = vmul.f32 1.0, %v503
    %v505 = vtanh.pop %v485
    %v506 = vmul.f32 %v504, %v453
    %508 = vrot.lane.b32.xlu0 %v505, 32
    %v509 = vpop.permute.xlu0 %508
    %v511 = vmul.f32 %v504, %v509
    %513 = vrot.lane.b32.xlu0 %v511, 32
    %v514 = vpop.permute.xlu0 %513
    %v516 = vadd.f32 %v506, %v514
    %v517 = vtanh.pop %v516
    %519 = vrot.lane.b32.xlu0 %v517, 32
    %v520 = vpop.permute.xlu0 %519
    %v522 = vmul.f32 %v504, %v520
    %524 = vrot.lane.b32.xlu0 %v522, 64
    %v525 = vpop.permute.xlu0 %524
    %v526 = vsel %vm159, %v525, 0
    %528 = vmatpush.msra.mxu0 0.0
    %529 = vmatpush.msra.mxu0 0.0
    %530 = vmatpush.msra.mxu0 0.0
    %531 = vmatpush.msra.mxu0 0.0
    %532 = vmatpush.msra.mxu0 0.0
    %533 = vmatpush.msra.mxu0 0.0
    %534 = vmatpush.msra.mxu0 0.0
    %535 = vmatpush.msra.mxu0 0.0
    %536 = vmatpush.msra.mxu0 0.0
    %537 = vmatpush.msra.mxu0 0.0
    %538 = vmatpush.msra.mxu0 0.0
    %539 = vmatpush.msra.mxu0 0.0
    %540 = vmatpush.msra.mxu0 %v140
    %541 = vmatpush.msra.mxu0 %v139
    %542 = vmatpush.msra.mxu0 %v138
    %543 = vmatpush.msra.mxu0 %v137
    %544 = vmatmul.f32.gmra.mxu0 %v526
    %v545 = vpop.f32.mrf.mxu0
    %v546 = vadd.f32 0.0, %v545
    %547 = vdwg.mxu0
    %v548 = vadd.f32 %v238, %v546
    %v549 = vxor.u32 %v548, 2147483648
    %v550 = vmul.f32 %v549, 1.442695
    %v551 = vpow.pop %v550
    %v552 = vadd.f32 %v551, 1.0
    %v553 = vrcp.pop %v552
    %v554 = vmul.f32 %v552, %v553
    %v555 = vsub.f32 1.0, %v554
    %v556 = vmul.f32 %v553, %v555
    %v557 = vadd.f32 %v553, %v556
    %vm558 = vweird.f32 %v552
    %vm559 = vweird.f32 %v553
    %vm560 = vmor %vm558, %vm559
    %v561 = vsel %vm560, %v553, %v557
    %v562 = vand.u32 2147483647, %v552
    %vm563 = vcmp.eq.f32.partialorder %v562, 8.507059e+37
    %v564 = vand.u32 %v552, 2147483648
    %v565 = vor.u32 1.1754944e-38, %v564
    %v566 = vsel %vm563, %v565, %v561
    %v567 = vmul.f32 1.0, %v566
    %v568 = vtanh.pop %v548
    %v569 = vmul.f32 %v567, %v516
    %571 = vrot.lane.b32.xlu0 %v568, 32
    %v572 = vpop.permute.xlu0 %571
    %v574 = vmul.f32 %v567, %v572
    %576 = vrot.lane.b32.xlu0 %v574, 32
    %v577 = vpop.permute.xlu0 %576
    %v579 = vadd.f32 %v569, %v577
    %v580 = vtanh.pop %v579
    %582 = vrot.lane.b32.xlu0 %v580, 32
    %v583 = vpop.permute.xlu0 %582
    %v585 = vmul.f32 %v567, %v583
    %587 = vrot.lane.b32.xlu0 %v585, 64
    %v588 = vpop.permute.xlu0 %587
    %v589 = vsel %vm159, %v588, 0
    %591 = vmatpush.msra.mxu0 0.0
    %592 = vmatpush.msra.mxu0 0.0
    %593 = vmatpush.msra.mxu0 0.0
    %594 = vmatpush.msra.mxu0 0.0
    %595 = vmatpush.msra.mxu0 0.0
    %596 = vmatpush.msra.mxu0 0.0
    %597 = vmatpush.msra.mxu0 0.0
    %598 = vmatpush.msra.mxu0 0.0
    %599 = vmatpush.msra.mxu0 0.0
    %600 = vmatpush.msra.mxu0 0.0
    %601 = vmatpush.msra.mxu0 0.0
    %602 = vmatpush.msra.mxu0 0.0
    %603 = vmatpush.msra.mxu0 %v140
    %604 = vmatpush.msra.mxu0 %v139
    %605 = vmatpush.msra.mxu0 %v138
    %606 = vmatpush.msra.mxu0 %v137
    %607 = vmatmul.f32.gmra.mxu0 %v589
    %v608 = vpop.f32.mrf.mxu0
    %v609 = vadd.f32 0.0, %v608
    %610 = vdwg.mxu0
    %v611 = vadd.f32 %v241, %v609
    %v612 = vxor.u32 %v611, 2147483648
    %v613 = vmul.f32 %v612, 1.442695
    %v614 = vpow.pop %v613
    %v615 = vadd.f32 %v614, 1.0
    %v616 = vrcp.pop %v615
    %v617 = vmul.f32 %v615, %v616
    %v618 = vsub.f32 1.0, %v617
    %v619 = vmul.f32 %v616, %v618
    %v620 = vadd.f32 %v616, %v619
    %vm621 = vweird.f32 %v615
    %vm622 = vweird.f32 %v616
    %vm623 = vmor %vm621, %vm622
    %v624 = vsel %vm623, %v616, %v620
    %v625 = vand.u32 2147483647, %v615
    %vm626 = vcmp.eq.f32.partialorder %v625, 8.507059e+37
    %v627 = vand.u32 %v615, 2147483648
    %v628 = vor.u32 1.1754944e-38, %v627
    %v629 = vsel %vm626, %v628, %v624
    %v630 = vmul.f32 1.0, %v629
    %v631 = vtanh.pop %v611
    %v632 = vmul.f32 %v630, %v579
    %634 = vrot.lane.b32.xlu0 %v631, 32
    %v635 = vpop.permute.xlu0 %634
    %v637 = vmul.f32 %v630, %v635
    %639 = vrot.lane.b32.xlu0 %v637, 32
    %v640 = vpop.permute.xlu0 %639
    %v642 = vadd.f32 %v632, %v640
    %v643 = vtanh.pop %v642
    %645 = vrot.lane.b32.xlu0 %v643, 32
    %v646 = vpop.permute.xlu0 %645
    %v648 = vmul.f32 %v630, %v646
    %650 = vrot.lane.b32.xlu0 %v648, 64
    %v651 = vpop.permute.xlu0 %650
    %v652 = vsel %vm159, %v651, 0
    %654 = vmatpush.msra.mxu0 0.0
    %655 = vmatpush.msra.mxu0 0.0
    %656 = vmatpush.msra.mxu0 0.0
    %657 = vmatpush.msra.mxu0 0.0
    %658 = vmatpush.msra.mxu0 0.0
    %659 = vmatpush.msra.mxu0 0.0
    %660 = vmatpush.msra.mxu0 0.0
    %661 = vmatpush.msra.mxu0 0.0
    %662 = vmatpush.msra.mxu0 0.0
    %663 = vmatpush.msra.mxu0 0.0
    %664 = vmatpush.msra.mxu0 0.0
    %665 = vmatpush.msra.mxu0 0.0
    %666 = vmatpush.msra.mxu0 %v140
    %667 = vmatpush.msra.mxu0 %v139
    %668 = vmatpush.msra.mxu0 %v138
    %669 = vmatpush.msra.mxu0 %v137
    %670 = vmatmul.f32.gmra.mxu0 %v652
    %v671 = vpop.f32.mrf.mxu0
    %v672 = vadd.f32 0.0, %v671
    %673 = vdwg.mxu0
    %v674 = vadd.f32 %v244, %v672
    %v675 = vxor.u32 %v674, 2147483648
    %v676 = vmul.f32 %v675, 1.442695
    %v677 = vpow.pop %v676
    %v678 = vadd.f32 %v677, 1.0
    %v679 = vrcp.pop %v678
    %v680 = vmul.f32 %v678, %v679
    %v681 = vsub.f32 1.0, %v680
    %v682 = vmul.f32 %v679, %v681
    %v683 = vadd.f32 %v679, %v682
    %vm684 = vweird.f32 %v678
    %vm685 = vweird.f32 %v679
    %vm686 = vmor %vm684, %vm685
    %v687 = vsel %vm686, %v679, %v683
    %v688 = vand.u32 2147483647, %v678
    %vm689 = vcmp.eq.f32.partialorder %v688, 8.507059e+37
    %v690 = vand.u32 %v678, 2147483648
    %v691 = vor.u32 1.1754944e-38, %v690
    %v692 = vsel %vm689, %v691, %v687
    %v693 = vmul.f32 1.0, %v692
    %v694 = vtanh.pop %v674
    %v695 = vmul.f32 %v693, %v642
    %697 = vrot.lane.b32.xlu0 %v694, 32
    %v698 = vpop.permute.xlu0 %697
    %v700 = vmul.f32 %v693, %v698
    %702 = vrot.lane.b32.xlu0 %v700, 32
    %v703 = vpop.permute.xlu0 %702
    %v705 = vadd.f32 %v695, %v703
    %v706 = vtanh.pop %v705
    %708 = vrot.lane.b32.xlu0 %v706, 32
    %v709 = vpop.permute.xlu0 %708
    %v711 = vmul.f32 %v693, %v709
    %713 = vrot.lane.b32.xlu0 %v711, 64
    %v714 = vpop.permute.xlu0 %713
    %v715 = vsel %vm159, %v714, 0
    %717 = vmatpush.msra.mxu0 0.0
    %718 = vmatpush.msra.mxu0 0.0
    %719 = vmatpush.msra.mxu0 0.0
    %720 = vmatpush.msra.mxu0 0.0
    %721 = vmatpush.msra.mxu0 0.0
    %722 = vmatpush.msra.mxu0 0.0
    %723 = vmatpush.msra.mxu0 0.0
    %724 = vmatpush.msra.mxu0 0.0
    %725 = vmatpush.msra.mxu0 0.0
    %726 = vmatpush.msra.mxu0 0.0
    %727 = vmatpush.msra.mxu0 0.0
    %728 = vmatpush.msra.mxu0 0.0
    %729 = vmatpush.msra.mxu0 %v140
    %730 = vmatpush.msra.mxu0 %v139
    %731 = vmatpush.msra.mxu0 %v138
    %732 = vmatpush.msra.mxu0 %v137
    %733 = vmatmul.f32.gmra.mxu0 %v715
    %v734 = vpop.f32.mrf.mxu0
    %v735 = vadd.f32 0.0, %v734
    %736 = vdwg.mxu0
    %v737 = vadd.f32 %v247, %v735
    %v738 = vxor.u32 %v737, 2147483648
    %v739 = vmul.f32 %v738, 1.442695
    %v740 = vpow.pop %v739
    %v741 = vadd.f32 %v740, 1.0
    %v742 = vrcp.pop %v741
    %v743 = vmul.f32 %v741, %v742
    %v744 = vsub.f32 1.0, %v743
    %v745 = vmul.f32 %v742, %v744
    %v746 = vadd.f32 %v742, %v745
    %vm747 = vweird.f32 %v741
    %vm748 = vweird.f32 %v742
    %vm749 = vmor %vm747, %vm748
    %v750 = vsel %vm749, %v742, %v746
    %v751 = vand.u32 2147483647, %v741
    %vm752 = vcmp.eq.f32.partialorder %v751, 8.507059e+37
    %v753 = vand.u32 %v741, 2147483648
    %v754 = vor.u32 1.1754944e-38, %v753
    %v755 = vsel %vm752, %v754, %v750
    %v756 = vmul.f32 1.0, %v755
    %v757 = vtanh.pop %v737
    %v758 = vmul.f32 %v756, %v705
    %760 = vrot.lane.b32.xlu0 %v757, 32
    %v761 = vpop.permute.xlu0 %760
    %v763 = vmul.f32 %v756, %v761
    %765 = vrot.lane.b32.xlu0 %v763, 32
    %v766 = vpop.permute.xlu0 %765
    %v768 = vadd.f32 %v758, %v766
    %v769 = vtanh.pop %v768
    %771 = vrot.lane.b32.xlu0 %v769, 32
    %v772 = vpop.permute.xlu0 %771
    %v774 = vmul.f32 %v756, %v772
    %776 = vrot.lane.b32.xlu0 %v774, 64
    %v777 = vpop.permute.xlu0 %776
    %v778 = vsel %vm159, %v777, 0
    %780 = vmatpush.msra.mxu0 0.0
    %781 = vmatpush.msra.mxu0 0.0
    %782 = vmatpush.msra.mxu0 0.0
    %783 = vmatpush.msra.mxu0 0.0
    %784 = vmatpush.msra.mxu0 0.0
    %785 = vmatpush.msra.mxu0 0.0
    %786 = vmatpush.msra.mxu0 0.0
    %787 = vmatpush.msra.mxu0 0.0
    %788 = vmatpush.msra.mxu0 0.0
    %789 = vmatpush.msra.mxu0 0.0
    %790 = vmatpush.msra.mxu0 0.0
    %791 = vmatpush.msra.mxu0 0.0
    %792 = vmatpush.msra.mxu0 %v140
    %793 = vmatpush.msra.mxu0 %v139
    %794 = vmatpush.msra.mxu0 %v138
    %795 = vmatpush.msra.mxu0 %v137
    %796 = vmatmul.f32.gmra.mxu0 %v778
    %v797 = vpop.f32.mrf.mxu0
    %v798 = vadd.f32 0.0, %v797
    %799 = vdwg.mxu0
    %v800 = vadd.f32 %v250, %v798
    %v801 = vxor.u32 %v800, 2147483648
    %v802 = vmul.f32 %v801, 1.442695
    %v803 = vpow.pop %v802
    %v804 = vadd.f32 %v803, 1.0
    %v805 = vrcp.pop %v804
    %v806 = vmul.f32 %v804, %v805
    %v807 = vsub.f32 1.0, %v806
    %v808 = vmul.f32 %v805, %v807
    %v809 = vadd.f32 %v805, %v808
    %vm810 = vweird.f32 %v804
    %vm811 = vweird.f32 %v805
    %vm812 = vmor %vm810, %vm811
    %v813 = vsel %vm812, %v805, %v809
    %v814 = vand.u32 2147483647, %v804
    %vm815 = vcmp.eq.f32.partialorder %v814, 8.507059e+37
    %v816 = vand.u32 %v804, 2147483648
    %v817 = vor.u32 1.1754944e-38, %v816
    %v818 = vsel %vm815, %v817, %v813
    %v819 = vmul.f32 1.0, %v818
    %v820 = vtanh.pop %v800
    %v821 = vmul.f32 %v819, %v768
    %823 = vrot.lane.b32.xlu0 %v820, 32
    %v824 = vpop.permute.xlu0 %823
    %v826 = vmul.f32 %v819, %v824
    %828 = vrot.lane.b32.xlu0 %v826, 32
    %v829 = vpop.permute.xlu0 %828
    %v831 = vadd.f32 %v821, %v829
    %v832 = vtanh.pop %v831
    %834 = vrot.lane.b32.xlu0 %v832, 32
    %v835 = vpop.permute.xlu0 %834
    %v837 = vmul.f32 %v819, %v835
    %839 = vrot.lane.b32.xlu0 %v837, 64
    %v840 = vpop.permute.xlu0 %839
    %v841 = vsel %vm159, %v840, 0
    %843 = vmatpush.msra.mxu0 0.0
    %844 = vmatpush.msra.mxu0 0.0
    %845 = vmatpush.msra.mxu0 0.0
    %846 = vmatpush.msra.mxu0 0.0
    %847 = vmatpush.msra.mxu0 0.0
    %848 = vmatpush.msra.mxu0 0.0
    %849 = vmatpush.msra.mxu0 0.0
    %850 = vmatpush.msra.mxu0 0.0
    %851 = vmatpush.msra.mxu0 0.0
    %852 = vmatpush.msra.mxu0 0.0
    %853 = vmatpush.msra.mxu0 0.0
    %854 = vmatpush.msra.mxu0 0.0
    %855 = vmatpush.msra.mxu0 %v140
    %856 = vmatpush.msra.mxu0 %v139
    %857 = vmatpush.msra.mxu0 %v138
    %858 = vmatpush.msra.mxu0 %v137
    %859 = vmatmul.f32.gmra.mxu0 %v841
    %v860 = vpop.f32.mrf.mxu0
    %v861 = vadd.f32 0.0, %v860
    %862 = vdwg.mxu0
    %v863 = vadd.f32 %v253, %v861
    %v864 = vxor.u32 %v863, 2147483648
    %v865 = vmul.f32 %v864, 1.442695
    %v866 = vpow.pop %v865
    %v867 = vadd.f32 %v866, 1.0
    %v868 = vrcp.pop %v867
    %v869 = vmul.f32 %v867, %v868
    %v870 = vsub.f32 1.0, %v869
    %v871 = vmul.f32 %v868, %v870
    %v872 = vadd.f32 %v868, %v871
    %vm873 = vweird.f32 %v867
    %vm874 = vweird.f32 %v868
    %vm875 = vmor %vm873, %vm874
    %v876 = vsel %vm875, %v868, %v872
    %v877 = vand.u32 2147483647, %v867
    %vm878 = vcmp.eq.f32.partialorder %v877, 8.507059e+37
    %v879 = vand.u32 %v867, 2147483648
    %v880 = vor.u32 1.1754944e-38, %v879
    %v881 = vsel %vm878, %v880, %v876
    %v882 = vmul.f32 1.0, %v881
    %v883 = vtanh.pop %v863
    %v884 = vmul.f32 %v882, %v831
    %886 = vrot.lane.b32.xlu0 %v883, 32
    %v887 = vpop.permute.xlu0 %886
    %v889 = vmul.f32 %v882, %v887
    %891 = vrot.lane.b32.xlu0 %v889, 32
    %v892 = vpop.permute.xlu0 %891
    %v894 = vadd.f32 %v884, %v892
    %v895 = vtanh.pop %v894
    %897 = vrot.lane.b32.xlu0 %v895, 32
    %v898 = vpop.permute.xlu0 %897
    %v900 = vmul.f32 %v882, %v898
    %902 = vrot.lane.b32.xlu0 %v900, 64
    %v903 = vpop.permute.xlu0 %902
    %v904 = vsel %vm159, %v903, 0
    %906 = vmatpush.msra.mxu0 0.0
    %907 = vmatpush.msra.mxu0 0.0
    %908 = vmatpush.msra.mxu0 0.0
    %909 = vmatpush.msra.mxu0 0.0
    %910 = vmatpush.msra.mxu0 0.0
    %911 = vmatpush.msra.mxu0 0.0
    %912 = vmatpush.msra.mxu0 0.0
    %913 = vmatpush.msra.mxu0 0.0
    %914 = vmatpush.msra.mxu0 0.0
    %915 = vmatpush.msra.mxu0 0.0
    %916 = vmatpush.msra.mxu0 0.0
    %917 = vmatpush.msra.mxu0 0.0
    %918 = vmatpush.msra.mxu0 %v140
    %919 = vmatpush.msra.mxu0 %v139
    %920 = vmatpush.msra.mxu0 %v138
    %921 = vmatpush.msra.mxu0 %v137
    %922 = vmatmul.f32.gmra.mxu0 %v904
    %v923 = vpop.f32.mrf.mxu0
    %v924 = vadd.f32 0.0, %v923
    %925 = vdwg.mxu0
    %v926 = vadd.f32 %v256, %v924
    %v927 = vxor.u32 %v926, 2147483648
    %v928 = vmul.f32 %v927, 1.442695
    %v929 = vpow.pop %v928
    %v930 = vadd.f32 %v929, 1.0
    %v931 = vrcp.pop %v930
    %v932 = vmul.f32 %v930, %v931
    %v933 = vsub.f32 1.0, %v932
    %v934 = vmul.f32 %v931, %v933
    %v935 = vadd.f32 %v931, %v934
    %vm936 = vweird.f32 %v930
    %vm937 = vweird.f32 %v931
    %vm938 = vmor %vm936, %vm937
    %v939 = vsel %vm938, %v931, %v935
    %v940 = vand.u32 2147483647, %v930
    %vm941 = vcmp.eq.f32.partialorder %v940, 8.507059e+37
    %v942 = vand.u32 %v930, 2147483648
    %v943 = vor.u32 1.1754944e-38, %v942
    %v944 = vsel %vm941, %v943, %v939
    %v945 = vmul.f32 1.0, %v944
    %v946 = vtanh.pop %v926
    %v947 = vmul.f32 %v945, %v894
    %949 = vrot.lane.b32.xlu0 %v946, 32
    %v950 = vpop.permute.xlu0 %949
    %v952 = vmul.f32 %v945, %v950
    %954 = vrot.lane.b32.xlu0 %v952, 32
    %v955 = vpop.permute.xlu0 %954
    %v957 = vadd.f32 %v947, %v955
    %v958 = vtanh.pop %v957
    %960 = vrot.lane.b32.xlu0 %v958, 32
    %v961 = vpop.permute.xlu0 %960
    %v963 = vmul.f32 %v945, %v961
    %965 = vrot.lane.b32.xlu0 %v963, 64
    %v966 = vpop.permute.xlu0 %965
    %v967 = vsel %vm159, %v966, 0
    %969 = vmatpush.msra.mxu0 0.0
    %970 = vmatpush.msra.mxu0 0.0
    %971 = vmatpush.msra.mxu0 0.0
    %972 = vmatpush.msra.mxu0 0.0
    %973 = vmatpush.msra.mxu0 0.0
    %974 = vmatpush.msra.mxu0 0.0
    %975 = vmatpush.msra.mxu0 0.0
    %976 = vmatpush.msra.mxu0 0.0
    %977 = vmatpush.msra.mxu0 0.0
    %978 = vmatpush.msra.mxu0 0.0
    %979 = vmatpush.msra.mxu0 0.0
    %980 = vmatpush.msra.mxu0 0.0
    %981 = vmatpush.msra.mxu0 %v140
    %982 = vmatpush.msra.mxu0 %v139
    %983 = vmatpush.msra.mxu0 %v138
    %984 = vmatpush.msra.mxu0 %v137
    %985 = vmatmul.f32.gmra.mxu0 %v967
    %v986 = vpop.f32.mrf.mxu0
    %v987 = vadd.f32 0.0, %v986
    %988 = vdwg.mxu0
    %v989 = vadd.f32 %v259, %v987
    %v990 = vxor.u32 %v989, 2147483648
    %v991 = vmul.f32 %v990, 1.442695
    %v992 = vpow.pop %v991
    %v993 = vadd.f32 %v992, 1.0
    %v994 = vrcp.pop %v993
    %v995 = vmul.f32 %v993, %v994
    %v996 = vsub.f32 1.0, %v995
    %v997 = vmul.f32 %v994, %v996
    %v998 = vadd.f32 %v994, %v997
    %vm999 = vweird.f32 %v993
    %vm1000 = vweird.f32 %v994
    %vm1001 = vmor %vm999, %vm1000
    %v1002 = vsel %vm1001, %v994, %v998
    %v1003 = vand.u32 2147483647, %v993
    %vm1004 = vcmp.eq.f32.partialorder %v1003, 8.507059e+37
    %v1005 = vand.u32 %v993, 2147483648
    %v1006 = vor.u32 1.1754944e-38, %v1005
    %v1007 = vsel %vm1004, %v1006, %v1002
    %v1008 = vmul.f32 1.0, %v1007
    %v1009 = vtanh.pop %v989
    %v1010 = vmul.f32 %v1008, %v957
    %1012 = vrot.lane.b32.xlu0 %v1009, 32
    %v1013 = vpop.permute.xlu0 %1012
    %v1015 = vmul.f32 %v1008, %v1013
    %1017 = vrot.lane.b32.xlu0 %v1015, 32
    %v1018 = vpop.permute.xlu0 %1017
    %v1020 = vadd.f32 %v1010, %v1018
    %v1021 = vtanh.pop %v1020
    %1023 = vrot.lane.b32.xlu0 %v1021, 32
    %v1024 = vpop.permute.xlu0 %1023
    %v1026 = vmul.f32 %v1008, %v1024
    %1028 = vrot.lane.b32.xlu0 %v1026, 64
    %v1029 = vpop.permute.xlu0 %1028
    %v1030 = vsel %vm159, %v1029, 0
    %1032 = vmatpush.msra.mxu0 0.0
    %1033 = vmatpush.msra.mxu0 0.0
    %1034 = vmatpush.msra.mxu0 0.0
    %1035 = vmatpush.msra.mxu0 0.0
    %1036 = vmatpush.msra.mxu0 0.0
    %1037 = vmatpush.msra.mxu0 0.0
    %1038 = vmatpush.msra.mxu0 0.0
    %1039 = vmatpush.msra.mxu0 0.0
    %1040 = vmatpush.msra.mxu0 0.0
    %1041 = vmatpush.msra.mxu0 0.0
    %1042 = vmatpush.msra.mxu0 0.0
    %1043 = vmatpush.msra.mxu0 0.0
    %1044 = vmatpush.msra.mxu0 %v140
    %1045 = vmatpush.msra.mxu0 %v139
    %1046 = vmatpush.msra.mxu0 %v138
    %1047 = vmatpush.msra.mxu0 %v137
    %1048 = vmatmul.f32.gmra.mxu0 %v1030
    %v1049 = vpop.f32.mrf.mxu0
    %v1050 = vadd.f32 0.0, %v1049
    %1051 = vdwg.mxu0
    %v1052 = vadd.f32 %v262, %v1050
    %v1053 = vxor.u32 %v1052, 2147483648
    %v1054 = vmul.f32 %v1053, 1.442695
    %v1055 = vpow.pop %v1054
    %v1056 = vadd.f32 %v1055, 1.0
    %v1057 = vrcp.pop %v1056
    %v1058 = vmul.f32 %v1056, %v1057
    %v1059 = vsub.f32 1.0, %v1058
    %v1060 = vmul.f32 %v1057, %v1059
    %v1061 = vadd.f32 %v1057, %v1060
    %vm1062 = vweird.f32 %v1056
    %vm1063 = vweird.f32 %v1057
    %vm1064 = vmor %vm1062, %vm1063
    %v1065 = vsel %vm1064, %v1057, %v1061
    %v1066 = vand.u32 2147483647, %v1056
    %vm1067 = vcmp.eq.f32.partialorder %v1066, 8.507059e+37
    %v1068 = vand.u32 %v1056, 2147483648
    %v1069 = vor.u32 1.1754944e-38, %v1068
    %v1070 = vsel %vm1067, %v1069, %v1065
    %v1071 = vmul.f32 1.0, %v1070
    %v1072 = vtanh.pop %v1052
    %v1073 = vmul.f32 %v1071, %v1020
    %1075 = vrot.lane.b32.xlu0 %v1072, 32
    %v1076 = vpop.permute.xlu0 %1075
    %v1078 = vmul.f32 %v1071, %v1076
    %1080 = vrot.lane.b32.xlu0 %v1078, 32
    %v1081 = vpop.permute.xlu0 %1080
    %v1083 = vadd.f32 %v1073, %v1081
    %v1084 = vtanh.pop %v1083
    %1086 = vrot.lane.b32.xlu0 %v1084, 32
    %v1087 = vpop.permute.xlu0 %1086
    %v1089 = vmul.f32 %v1071, %v1087
    %1091 = vrot.lane.b32.xlu0 %v1089, 64
    %v1092 = vpop.permute.xlu0 %1091
    %v1093 = vsel %vm159, %v1092, 0
    %1095 = vmatpush.msra.mxu0 0.0
    %1096 = vmatpush.msra.mxu0 0.0
    %1097 = vmatpush.msra.mxu0 0.0
    %1098 = vmatpush.msra.mxu0 0.0
    %1099 = vmatpush.msra.mxu0 0.0
    %1100 = vmatpush.msra.mxu0 0.0
    %1101 = vmatpush.msra.mxu0 0.0
    %1102 = vmatpush.msra.mxu0 0.0
    %1103 = vmatpush.msra.mxu0 0.0
    %1104 = vmatpush.msra.mxu0 0.0
    %1105 = vmatpush.msra.mxu0 0.0
    %1106 = vmatpush.msra.mxu0 0.0
    %1107 = vmatpush.msra.mxu0 %v140
    %1108 = vmatpush.msra.mxu0 %v139
    %1109 = vmatpush.msra.mxu0 %v138
    %1110 = vmatpush.msra.mxu0 %v137
    %1111 = vmatmul.f32.gmra.mxu0 %v1093
    %v1112 = vpop.f32.mrf.mxu0
    %v1113 = vadd.f32 0.0, %v1112
    %1114 = vdwg.mxu0
    %v1115 = vadd.f32 %v265, %v1113
    %v1116 = vxor.u32 %v1115, 2147483648
    %v1117 = vmul.f32 %v1116, 1.442695
    %v1118 = vpow.pop %v1117
    %v1119 = vadd.f32 %v1118, 1.0
    %v1120 = vrcp.pop %v1119
    %v1121 = vmul.f32 %v1119, %v1120
    %v1122 = vsub.f32 1.0, %v1121
    %v1123 = vmul.f32 %v1120, %v1122
    %v1124 = vadd.f32 %v1120, %v1123
    %vm1125 = vweird.f32 %v1119
    %vm1126 = vweird.f32 %v1120
    %vm1127 = vmor %vm1125, %vm1126
    %v1128 = vsel %vm1127, %v1120, %v1124
    %v1129 = vand.u32 2147483647, %v1119
    %vm1130 = vcmp.eq.f32.partialorder %v1129, 8.507059e+37
    %v1131 = vand.u32 %v1119, 2147483648
    %v1132 = vor.u32 1.1754944e-38, %v1131
    %v1133 = vsel %vm1130, %v1132, %v1128
    %v1134 = vmul.f32 1.0, %v1133
    %v1135 = vtanh.pop %v1115
    %v1136 = vmul.f32 %v1134, %v1083
    %1138 = vrot.lane.b32.xlu0 %v1135, 32
    %v1139 = vpop.permute.xlu0 %1138
    %v1141 = vmul.f32 %v1134, %v1139
    %1143 = vrot.lane.b32.xlu0 %v1141, 32
    %v1144 = vpop.permute.xlu0 %1143
    %v1146 = vadd.f32 %v1136, %v1144
    %v1147 = vtanh.pop %v1146
    %1149 = vrot.lane.b32.xlu0 %v1147, 32
    %v1150 = vpop.permute.xlu0 %1149
    %v1152 = vmul.f32 %v1134, %v1150
    %1154 = vrot.lane.b32.xlu0 %v1152, 64
    %v1155 = vpop.permute.xlu0 %1154
    %v1156 = vsel %vm159, %v1155, 0
    %1158 = vmatpush.msra.mxu0 0.0
    %1159 = vmatpush.msra.mxu0 0.0
    %1160 = vmatpush.msra.mxu0 0.0
    %1161 = vmatpush.msra.mxu0 0.0
    %1162 = vmatpush.msra.mxu0 0.0
    %1163 = vmatpush.msra.mxu0 0.0
    %1164 = vmatpush.msra.mxu0 0.0
    %1165 = vmatpush.msra.mxu0 0.0
    %1166 = vmatpush.msra.mxu0 0.0
    %1167 = vmatpush.msra.mxu0 0.0
    %1168 = vmatpush.msra.mxu0 0.0
    %1169 = vmatpush.msra.mxu0 0.0
    %1170 = vmatpush.msra.mxu0 %v140
    %1171 = vmatpush.msra.mxu0 %v139
    %1172 = vmatpush.msra.mxu0 %v138
    %1173 = vmatpush.msra.mxu0 %v137
    %1174 = vmatmul.f32.gmra.mxu0 %v1156
    %v1175 = vpop.f32.mrf.mxu0
    %v1176 = vadd.f32 0.0, %v1175
    %1177 = vdwg.mxu0
    %v1178 = vadd.f32 %v268, %v1176
    %v1179 = vxor.u32 %v1178, 2147483648
    %v1180 = vmul.f32 %v1179, 1.442695
    %v1181 = vpow.pop %v1180
    %v1182 = vadd.f32 %v1181, 1.0
    %v1183 = vrcp.pop %v1182
    %v1184 = vmul.f32 %v1182, %v1183
    %v1185 = vsub.f32 1.0, %v1184
    %v1186 = vmul.f32 %v1183, %v1185
    %v1187 = vadd.f32 %v1183, %v1186
    %vm1188 = vweird.f32 %v1182
    %vm1189 = vweird.f32 %v1183
    %vm1190 = vmor %vm1188, %vm1189
    %v1191 = vsel %vm1190, %v1183, %v1187
    %v1192 = vand.u32 2147483647, %v1182
    %vm1193 = vcmp.eq.f32.partialorder %v1192, 8.507059e+37
    %v1194 = vand.u32 %v1182, 2147483648
    %v1195 = vor.u32 1.1754944e-38, %v1194
    %v1196 = vsel %vm1193, %v1195, %v1191
    %v1197 = vmul.f32 1.0, %v1196
    %v1198 = vtanh.pop %v1178
    %v1199 = vmul.f32 %v1197, %v1146
    %1201 = vrot.lane.b32.xlu0 %v1198, 32
    %v1202 = vpop.permute.xlu0 %1201
    %v1204 = vmul.f32 %v1197, %v1202
    %1206 = vrot.lane.b32.xlu0 %v1204, 32
    %v1207 = vpop.permute.xlu0 %1206
    %v1209 = vadd.f32 %v1199, %v1207
    %v1210 = vtanh.pop %v1209
    %1212 = vrot.lane.b32.xlu0 %v1210, 32
    %v1213 = vpop.permute.xlu0 %1212
    %v1215 = vmul.f32 %v1197, %v1213
    %1217 = vrot.lane.b32.xlu0 %v1215, 64
    %v1218 = vpop.permute.xlu0 %1217
    %v1219 = vsel %vm159, %v1218, 0
    %1221 = vmatpush.msra.mxu0 0.0
    %1222 = vmatpush.msra.mxu0 0.0
    %1223 = vmatpush.msra.mxu0 0.0
    %1224 = vmatpush.msra.mxu0 0.0
    %1225 = vmatpush.msra.mxu0 0.0
    %1226 = vmatpush.msra.mxu0 0.0
    %1227 = vmatpush.msra.mxu0 0.0
    %1228 = vmatpush.msra.mxu0 0.0
    %1229 = vmatpush.msra.mxu0 0.0
    %1230 = vmatpush.msra.mxu0 0.0
    %1231 = vmatpush.msra.mxu0 0.0
    %1232 = vmatpush.msra.mxu0 0.0
    %1233 = vmatpush.msra.mxu0 %v140
    %1234 = vmatpush.msra.mxu0 %v139
    %1235 = vmatpush.msra.mxu0 %v138
    %1236 = vmatpush.msra.mxu0 %v137
    %1237 = vmatmul.f32.gmra.mxu0 %v1219
    %v1238 = vpop.f32.mrf.mxu0
    %v1239 = vadd.f32 0.0, %v1238
    %1240 = vdwg.mxu0
    %v1241 = vadd.f32 %v271, %v1239
    %v1242 = vxor.u32 %v1241, 2147483648
    %v1243 = vmul.f32 %v1242, 1.442695
    %v1244 = vpow.pop %v1243
    %v1245 = vadd.f32 %v1244, 1.0
    %v1246 = vrcp.pop %v1245
    %v1247 = vmul.f32 %v1245, %v1246
    %v1248 = vsub.f32 1.0, %v1247
    %v1249 = vmul.f32 %v1246, %v1248
    %v1250 = vadd.f32 %v1246, %v1249
    %vm1251 = vweird.f32 %v1245
    %vm1252 = vweird.f32 %v1246
    %vm1253 = vmor %vm1251, %vm1252
    %v1254 = vsel %vm1253, %v1246, %v1250
    %v1255 = vand.u32 2147483647, %v1245
    %vm1256 = vcmp.eq.f32.partialorder %v1255, 8.507059e+37
    %v1257 = vand.u32 %v1245, 2147483648
    %v1258 = vor.u32 1.1754944e-38, %v1257
    %v1259 = vsel %vm1256, %v1258, %v1254
    %v1260 = vmul.f32 1.0, %v1259
    %v1261 = vtanh.pop %v1241
    %v1262 = vmul.f32 %v1260, %v1209
    %1264 = vrot.lane.b32.xlu0 %v1261, 32
    %v1265 = vpop.permute.xlu0 %1264
    %v1267 = vmul.f32 %v1260, %v1265
    %1269 = vrot.lane.b32.xlu0 %v1267, 32
    %v1270 = vpop.permute.xlu0 %1269
    %v1272 = vadd.f32 %v1262, %v1270
    %v1273 = vtanh.pop %v1272
    %1275 = vrot.lane.b32.xlu0 %v1273, 32
    %v1276 = vpop.permute.xlu0 %1275
    %v1278 = vmul.f32 %v1260, %v1276
    %v1279 = vld [vmem:[#allocation2 + $0xf0] sm:$0xff]
    %v1280 = vld [vmem:[#allocation2 + $0xf8] sm:$0xff]
    %v1281 = vld [vmem:[#allocation2 + $0x100] sm:$0xff]
    %v1282 = vld [vmem:[#allocation2 + $0x108] sm:$0xff]
    %v1283 = vld [vmem:[#allocation2 + $0x110] sm:$0xff]
    %v1284 = vld [vmem:[#allocation2 + $0x118] sm:$0xff]
    %v1285 = vld [vmem:[#allocation2 + $0x120] sm:$0xff]
    %v1286 = vld [vmem:[#allocation2 + $0x128] sm:$0xff]
    %v1287 = vld [vmem:[#allocation2 + $0x190] sm:$0x1]
    %v1288 = vperm.slane %v1287, 0
    %v1290 = vsel %vm74, %v132, 0
    %1292 = vmatpush.msra.mxu0 0.0
    %1293 = vmatpush.msra.mxu0 0.0
    %1294 = vmatpush.msra.mxu0 0.0
    %1295 = vmatpush.msra.mxu0 0.0
    %1296 = vmatpush.msra.mxu0 0.0
    %1297 = vmatpush.msra.mxu0 0.0
    %1298 = vmatpush.msra.mxu0 0.0
    %1299 = vmatpush.msra.mxu0 0.0
    %1300 = vmatpush.msra.mxu0 %v1286
    %1301 = vmatpush.msra.mxu0 %v1285
    %1302 = vmatpush.msra.mxu0 %v1284
    %1303 = vmatpush.msra.mxu0 %v1283
    %1304 = vmatpush.msra.mxu0 %v1282
    %1305 = vmatpush.msra.mxu0 %v1281
    %1306 = vmatpush.msra.mxu0 %v1280
    %1307 = vmatpush.msra.mxu0 %v1279
    %1308 = vmatmul.f32.gmra.mxu0 %v1290
    %v1309 = vpop.f32.mrf.mxu0
    %v1310 = vadd.f32 %v1288, %v1309
    %1311 = vdwg.mxu0
    %v1312 = vld [vmem:[#allocation2 + $0x130] sm:$0xff]
    %v1313 = vld [vmem:[#allocation2 + $0x138] sm:$0xff]
    %v1314 = vld [vmem:[#allocation2 + $0x140] sm:$0xff]
    %v1315 = vld [vmem:[#allocation2 + $0x148] sm:$0xff]
    %1317 = vrot.lane.b32.xlu0 %v1278, 64
    %v1318 = vpop.permute.xlu0 %1317
    %1323 = vrot.lane.b32.xlu0 %v1312, 64
    %v1324 = vpop.permute.xlu0 %1323
    %1325 = vrot.lane.b32.xlu0 %v1313, 64
    %v1326 = vpop.permute.xlu0 %1325
    %1327 = vrot.lane.b32.xlu0 %v1314, 64
    %v1328 = vpop.permute.xlu0 %1327
    %1329 = vrot.lane.b32.xlu0 %v1315, 64
    %v1330 = vpop.permute.xlu0 %1329
    %1336 = vrot.lane.b32.xlu0 %v1288, 64
    %v1337 = vpop.permute.xlu0 %1336
    %v1339 = vsel %vm159, %v1318, 0
    %1341 = vmatpush.msra.mxu0 0.0
    %1342 = vmatpush.msra.mxu0 0.0
    %1343 = vmatpush.msra.mxu0 0.0
    %1344 = vmatpush.msra.mxu0 0.0
    %1345 = vmatpush.msra.mxu0 0.0
    %1346 = vmatpush.msra.mxu0 0.0
    %1347 = vmatpush.msra.mxu0 0.0
    %1348 = vmatpush.msra.mxu0 0.0
    %1349 = vmatpush.msra.mxu0 0.0
    %1350 = vmatpush.msra.mxu0 0.0
    %1351 = vmatpush.msra.mxu0 0.0
    %1352 = vmatpush.msra.mxu0 0.0
    %1353 = vmatpush.msra.mxu0 %v1330
    %1354 = vmatpush.msra.mxu0 %v1328
    %1355 = vmatpush.msra.mxu0 %v1326
    %1356 = vmatpush.msra.mxu0 %v1324
    %1357 = vmatmul.f32.gmra.mxu0 %v1339
    %v1358 = vpop.f32.mrf.mxu0
    %v1359 = vadd.f32 %v1337, %v1358
    %1360 = vdwg.mxu0
    %1362 = vrot.lane.b32.xlu0 %v1310, 96
    %v1363 = vpop.permute.xlu0 %1362
    %v1365 = vmul.f32 %v1310, %v1363
    %v1366 = vmul.f32 %v1365, %v1359
    %v1367 = vld [vmem:[#allocation2 + $0x150] sm:$0xff]
    %v1368 = vld [vmem:[#allocation2 + $0x158] sm:$0xff]
    %v1369 = vld [vmem:[#allocation2 + $0x160] sm:$0xff]
    %v1370 = vld [vmem:[#allocation2 + $0x168] sm:$0xff]
    %v1371 = vld [vmem:[#allocation2 + $0x198] sm:$0x1]
    %v1372 = vperm.slane %v1371, 0
    %v1374 = vsel %vm159, %v1366, 0
    %1376 = vmatpush.msra.mxu0 0.0
    %1377 = vmatpush.msra.mxu0 0.0
    %1378 = vmatpush.msra.mxu0 0.0
    %1379 = vmatpush.msra.mxu0 0.0
    %1380 = vmatpush.msra.mxu0 0.0
    %1381 = vmatpush.msra.mxu0 0.0
    %1382 = vmatpush.msra.mxu0 0.0
    %1383 = vmatpush.msra.mxu0 0.0
    %1384 = vmatpush.msra.mxu0 0.0
    %1385 = vmatpush.msra.mxu0 0.0
    %1386 = vmatpush.msra.mxu0 0.0
    %1387 = vmatpush.msra.mxu0 0.0
    %1388 = vmatpush.msra.mxu0 %v1370
    %1389 = vmatpush.msra.mxu0 %v1369
    %1390 = vmatpush.msra.mxu0 %v1368
    %1391 = vmatpush.msra.mxu0 %v1367
    %1392 = vmatmul.f32.gmra.mxu0 %v1374
    %v1393 = vpop.f32.mrf.mxu0
    %v1394 = vadd.f32 %v1372, %v1393
    %1395 = vdwg.mxu0
    %vm1396 = vcmask 64512
    %1397 = vst.msk [vmem:[%s3] sm:$0xff] %vm1396, %v1394
    // Predicated region
    $region18: #{lmf_forward.1} parent=1 // pred_check
      _
    $region19: #{lmf_forward.1} parent=1 // pred_check_branch
      %1399 = sbr.rel (0) target = $region21
    $region20: #{lmf_forward.1} parent=1 // pred_region
      _
    $region21: #{lmf_forward.1} parent=1 // pred_fallthru
      _
    // Predicated region
    $region22: #{lmf_forward.1} parent=1 // pred_check
      _
    $region23: #{lmf_forward.1} parent=1 // pred_check_branch
      %1401 = sbr.rel (0) target = $region25
    $region24: #{lmf_forward.1} parent=1 // pred_region
      _
    $region25: #{lmf_forward.1} parent=1 // pred_fallthru
      _
    %1402 = vsyncpa [#allocation3], 1

</llo_original>
